<compile_context>
chip_gen: v7x
topology: tpu7x:2x2x1
jax: 0.10.0
libtpu: 0.0.40
codegen_flags: <defaults>
</compile_context>

<pallas_src>
import jax
import jax.numpy as jnp
from jax import lax
from jax.experimental import pallas as pl
from jax.experimental.pallas import tpu as pltpu


# ----------------------------------------------------------------------------
# Kernels
# ----------------------------------------------------------------------------
def _s2d_gather_kernel(idx_ref, x_ref, o_ref):
    """De-interleave with one constant lane gather per channel (bit-exact)."""
    # idx_ref: (1, 4W) int32  src lane for each dest lane (dest ordered bh,bw,wo)
    # x_ref:   (c_blk, ho_blk, 4W)  where x4[n,c,ho, bh*W + w] = x[n,c,4ho+bh,w]
    # o_ref:   (4, 4, c_blk, ho_blk, Wo)  indexed [bh, bw, c, ho, wo]
    c_blk, ho_blk, w4 = x_ref.shape
    wo = w4 // 16
    idx = jnp.broadcast_to(idx_ref[...], (ho_blk, w4))

    def per_channel(ci, carry):
        rows = x_ref[ci]                                       # (ho_blk, 4W)
        # Gather on 32-bit data (bf16 round-trips exactly through f32).
        vals = rows.astype(jnp.float32) if rows.dtype == jnp.bfloat16 else rows
        y = jnp.take_along_axis(vals, idx, axis=-1)            # lanes -> (bh,bw,wo)
        for bh in range(4):
            for bw in range(4):
                g = 4 * bh + bw
                o_ref[bh, bw, ci] = y[:, g * wo:(g + 1) * wo].astype(o_ref.dtype)
        return carry

    lax.fori_loop(0, c_blk, per_channel, 0)


def _s2d_matmul_kernel(perm_ref, x_ref, o_ref):
    """Fallback: de-interleave via a constant one-hot MXU matmul per row phase.

    Exact for finite, non-subnormal values: f32 is split into 3 disjoint bf16
    pieces (8+8+8 mantissa bits), each permuted exactly, re-summed in f32.
    Only used when the lane-gather path is unavailable on this toolchain.
    """
    c_blk, ho_blk, w4 = x_ref.shape
    w = w4 // 4
    wo = w // 4
    p = perm_ref[...]                                          # (W, W) bf16 one-hot

    def per_channel(ci, carry):
        rows4 = x_ref[ci]                                      # (ho_blk, 4W)
        for bh in range(4):
            rows = rows4[:, bh * w:(bh + 1) * w]               # (ho_blk, W)
            if rows.dtype == jnp.float32:
                hi = rows.astype(jnp.bfloat16)
                r1 = rows - hi.astype(jnp.float32)
                mid = r1.astype(jnp.bfloat16)
                lo = (r1 - mid.astype(jnp.float32)).astype(jnp.bfloat16)
                y = (jnp.dot(hi, p, preferred_element_type=jnp.float32)
                     + jnp.dot(mid, p, preferred_element_type=jnp.float32)
                     + jnp.dot(lo, p, preferred_element_type=jnp.float32))
            else:  # bfloat16: one exact one-hot matmul
                y = jnp.dot(rows.astype(jnp.bfloat16), p,
                            preferred_element_type=jnp.float32)
            for bw in range(4):
                o_ref[bh, bw, ci] = y[:, bw * wo:(bw + 1) * wo].astype(o_ref.dtype)
        return carry

    lax.fori_loop(0, c_blk, per_channel, 0)


# ----------------------------------------------------------------------------
# Block / VMEM sizing
# ----------------------------------------------------------------------------
def _round_up(v, m):
    return -(-v // m) * m


def _vmem_budget_bytes():
    """Scoped-VMEM to request: half of physical VMEM, capped at 64 MiB
    (v5e/v6e: 128 MiB physical; v7x: only 64 MiB)."""
    try:
        cap = int(pltpu.get_tpu_info().vmem_capacity_bytes)
    except Exception:            # off-TPU / API drift: conservative default
        cap = 64 << 20
    return int(min(cap // 2, 64 << 20))


def _pick_blocks(N, C, Ho, W, Wo, itemsize, vmem_budget):
    """Pick (c_blk, ho_blk) so that double-buffered in+out blocks (with (8,128)
    layout padding -- the output (ho, Wo) tiles pad Wo up to 128) fit in ~70%
    of the budget, per-step payload stays MB-scale, and there are enough
    parallel grid steps for multi-core chips."""
    def footprint(cb, hb):
        inb = cb * _round_up(hb, 8) * _round_up(4 * W, 128) * itemsize
        outb = 16 * cb * _round_up(hb, 8) * _round_up(Wo, 128) * itemsize
        return 2 * (inb + outb)                   # double-buffered in and out

    budget = 0.7 * vmem_budget
    payload_cap = 8 << 20                         # per-step payload ceiling

    c_blk = 1
    for cand in range(1, C + 1):
        if C % cand:
            continue
        if (footprint(cand, Ho) <= budget
                and cand * Ho * 4 * W * itemsize <= payload_cap):
            c_blk = cand

    ho_blk = Ho
    # If even one channel per step overflows VMEM, split the row panels.
    while (footprint(c_blk, ho_blk) > budget
           and ho_blk % 2 == 0 and (ho_blk // 2) % 8 == 0):
        ho_blk //= 2
    # If the grid is too small to feed both v7x TensorCores, split rows
    # (only when panels stay 8-row aligned and per-step payload stays >=256KB).
    if N * (C // c_blk) * (Ho // ho_blk) < 4:
        for div in (2, 4):
            cand = Ho // div
            if (cand and Ho % div == 0 and cand % 8 == 0
                    and cand * c_blk * 4 * W * itemsize >= (256 << 10)):
                ho_blk = cand
                break
    return c_blk, ho_blk


# ----------------------------------------------------------------------------
# pallas_call wrapper
# ----------------------------------------------------------------------------
def _s2d_pallas(x, use_gather):
    N, C, H, W = x.shape
    Ho, Wo = H // 4, W // 4
    itemsize = jnp.dtype(x.dtype).itemsize
    budget = _vmem_budget_bytes()
    c_blk, ho_blk = _pick_blocks(N, C, Ho, W, Wo, itemsize, budget)

    # Free row-major view: row ho holds the 4 input rows {4*ho+bh} back to back.
    x4 = x.reshape(N, C, Ho, 4 * W)

    if use_gather:
        # Constant lane permutation: dest d = bh*W + bw*Wo + wo  <-  src
        # bh*W + 4*wo + bw.  Passed as a tiny (1, 4W) int32 input.
        d = jnp.arange(4 * W, dtype=jnp.int32)
        row_phase, rem = d // W, d % W
        src = row_phase * W + 4 * (rem % Wo) + rem // Wo
        aux = src.reshape(1, 4 * W)
        aux_spec = pl.BlockSpec((1, 4 * W), lambda n, cg, hg: (0, 0))
        kernel = _s2d_gather_kernel
        flops = 0
    else:
        # One-hot lane-permutation matrix: column (w%4)*Wo + w//4 picks lane w.
        w_idx = jnp.arange(W)
        cols = (w_idx % 4) * Wo + (w_idx // 4)
        aux = jax.nn.one_hot(cols, W, dtype=jnp.bfloat16)      # (W, W)
        aux_spec = pl.BlockSpec((W, W), lambda n, cg, hg: (0, 0))
        kernel = _s2d_matmul_kernel
        flops = 2 * N * C * 4 * Ho * W * W * (3 if x.dtype == jnp.float32 else 1)

    grid = (N, C // c_blk, Ho // ho_blk)
    out6 = pl.pallas_call(
        kernel,
        out_shape=jax.ShapeDtypeStruct((N, 4, 4, C, Ho, Wo), x.dtype),
        grid=grid,
        in_specs=[
            aux_spec,
            pl.BlockSpec((pl.Squeezed(), c_blk, ho_blk, 4 * W),
                         lambda n, cg, hg: (n, cg, hg, 0)),
        ],
        out_specs=pl.BlockSpec((pl.Squeezed(), 4, 4, c_blk, ho_blk, Wo),
                               lambda n, cg, hg: (n, 0, 0, cg, hg, 0)),
        compiler_params=pltpu.CompilerParams(
            dimension_semantics=("parallel", "parallel", "parallel"),
            vmem_limit_bytes=int(budget)),
        cost_estimate=pl.CostEstimate(
            flops=int(flops), transcendentals=0,
            bytes_accessed=int(2 * x.size * itemsize + aux.size * aux.dtype.itemsize)),
    )(aux, x4)

    # Free view to the PyTorch channel order bh*4C + bw*C + c.
    return out6.reshape(N, 16 * C, Ho, Wo)


# ----------------------------------------------------------------------------
# Lane-gather availability probe (one tiny compile per distinct W) + dispatch
# ----------------------------------------------------------------------------
_GATHER_OK = {}


def _lane_gather_supported(W):
    key = int(W)
    if key not in _GATHER_OK:
        ok = False
        try:
            probe = jnp.arange(8 * W, dtype=jnp.float32).reshape(1, 1, 8, W)
            got = jax.block_until_ready(_s2d_pallas(probe, use_gather=True))
            ok = bool(jnp.array_equal(got, space_to_depth_ref(probe)))
        except Exception:
            ok = False
        _GATHER_OK[key] = ok
    return _GATHER_OK[key]


def space_to_depth(x, block_size=4):
    """Pallas TPU implementation of SpaceToDepthModule.forward (block_size=4)."""
    assert block_size == 4, "module asserts block_size == 4"
    N, C, H, W = x.shape
    assert H % 4 == 0 and W % 4 == 0, "H and W must be multiples of 4"
    assert x.dtype in (jnp.float32, jnp.bfloat16), "supported dtypes: f32, bf16"

    if _lane_gather_supported(W):
        try:
            return jax.block_until_ready(_s2d_pallas(x, use_gather=True))
        except Exception:
            pass                      # extremely unlikely; use the proven path
    return _s2d_pallas(x, use_gather=False)


def space_to_depth_ref(x, block_size=4):
    """Pure-JAX reference of the PyTorch forward."""
    N, C, H, W = x.shape
    bs = block_size
    y = x.reshape(N, C, H // bs, bs, W // bs, bs)
    y = jnp.transpose(y, (0, 3, 5, 1, 2, 4))
    return y.reshape(N, C * bs * bs, H // bs, W // bs)


# ----------------------------------------------------------------------------
# Self-test
# ----------------------------------------------------------------------------
if __name__ == "__main__":
    key = jax.random.PRNGKey(0)
    k1, k2, k3 = jax.random.split(key, 3)

    # Primary small case (module-consistent shape).  The op is a pure
    # permutation, so compare bit-exactly.
    x = jax.random.normal(k1, (2, 4, 16, 16), dtype=jnp.float32)
    out = jax.block_until_ready(space_to_depth(x))
    ref = space_to_depth_ref(x)
    assert out.shape == ref.shape == (2, 64, 4, 4)
    assert jnp.array_equal(out, ref), "f32 mismatch vs reference"

    # TResNet-stem-like channel count (C=3) and a different W.
    x3 = jax.random.normal(k2, (1, 3, 16, 32), dtype=jnp.float32)
    out3 = jax.block_until_ready(space_to_depth(x3))
    assert jnp.array_equal(out3, space_to_depth_ref(x3)), "C=3 mismatch vs reference"

    # bfloat16 path.
    xb = jax.random.normal(k3, (2, 4, 16, 16), dtype=jnp.bfloat16)
    outb = jax.block_until_ready(space_to_depth(xb))
    assert jnp.array_equal(outb, space_to_depth_ref(xb)), "bf16 mismatch vs reference"

    print("KERNEL_OK")
</pallas_src>

<mosaic_0001>
module attributes {stable_mosaic.version = 11 : i64} {
  func.func @_s2d_gather_kernel(%arg0: i32, %arg1: i32, %arg2: i32, %arg3: memref<1x64xi32, #tpu.memory_space<vmem>>, %arg4: memref<1x1x2x64xf32, #tpu.memory_space<vmem>>, %arg5: memref<1x4x4x1x2x4xf32, #tpu.memory_space<vmem>>) attributes {dimension_semantics = [#tpu.dimension_semantics<parallel>, #tpu.dimension_semantics<parallel>, #tpu.dimension_semantics<parallel>], iteration_bounds = array<i64: 1, 1, 1>, scalar_prefetch = 0 : i64, scratch_operands = 0 : i64, tpu.core_type = #tpu.core_type<tc>, window_params = [{pipeline_mode = #tpu.pipeline_mode<synchronous>, transform_indices = @transform_0, window_bounds = array<i64: 1, 64>}, {transform_indices = @transform_1, window_bounds = array<i64: 1, 1, 2, 64>}, {transform_indices = @transform_2, window_bounds = array<i64: 1, 4, 4, 1, 2, 4>}]} {
    %c0 = arith.constant 0 : index
    %c0_0 = arith.constant 0 : index
    %0 = vector.load %arg3[%c0, %c0_0] : memref<1x64xi32, #tpu.memory_space<vmem>>, vector<1x64xi32>
    %1 = vector.shape_cast %0 : vector<1x64xi32> to vector<1x64xi32>
    %2 = vector.broadcast %1 : vector<1x64xi32> to vector<2x64xi32>
    %c0_i32 = arith.constant 0 : i32
    %c0_1 = arith.constant 0 : index
    %3 = arith.index_cast %c0_i32 : i32 to index
    %c0_2 = arith.constant 0 : index
    %c0_3 = arith.constant 0 : index
    %4 = vector.load %arg4[%c0_1, %3, %c0_2, %c0_3] : memref<1x1x2x64xf32, #tpu.memory_space<vmem>>, vector<1x1x2x64xf32>
    %5 = vector.shape_cast %4 : vector<1x1x2x64xf32> to vector<2x64xf32>
    %c0_i32_4 = arith.constant 0 : i32
    %6 = vector.broadcast %c0_i32_4 : i32 to vector<2x64xi32>
    %7 = arith.cmpi slt, %2, %6 : vector<2x64xi32>
    %c64_i32 = arith.constant 64 : i32
    %8 = vector.broadcast %c64_i32 : i32 to vector<2x64xi32>
    %9 = arith.addi %2, %8 : vector<2x64xi32>
    %10 = arith.select %7, %9, %2 : vector<2x64xi1>, vector<2x64xi32>
    %11 = vector.shape_cast %10 : vector<2x64xi32> to vector<2x64x1xi32>
    %12 = vector.shape_cast %11 : vector<2x64x1xi32> to vector<2x64xi32>
    %13 = tpu.dynamic_gather %5[%12] in [1] : vector<2x64xf32>, vector<2x64xi32> -> vector<2x64xf32>
    %14 = vector.extract_strided_slice %13 {offsets = [0, 0], sizes = [2, 4], strides = [1, 1]} : vector<2x64xf32> to vector<2x4xf32>
    %c0_5 = arith.constant 0 : index
    %c0_6 = arith.constant 0 : index
    %c0_7 = arith.constant 0 : index
    %15 = arith.index_cast %c0_i32 : i32 to index
    %c0_8 = arith.constant 0 : index
    %c0_9 = arith.constant 0 : index
    %16 = vector.load %arg5[%c0_5, %c0_6, %c0_7, %15, %c0_8, %c0_9] : memref<1x4x4x1x2x4xf32, #tpu.memory_space<vmem>>, vector<1x1x1x1x2x4xf32>
    %17 = vector.shape_cast %16 : vector<1x1x1x1x2x4xf32> to vector<2x4xf32>
    %18 = vector.shape_cast %14 : vector<2x4xf32> to vector<1x1x1x1x2x4xf32>
    tpu.vector_store %arg5[%c0_5, %c0_6, %c0_7, %15, %c0_8, %c0_9], %18 {strides = array<i32>} : memref<1x4x4x1x2x4xf32, #tpu.memory_space<vmem>>, vector<1x1x1x1x2x4xf32>,
    %19 = vector.extract_strided_slice %13 {offsets = [0, 4], sizes = [2, 4], strides = [1, 1]} : vector<2x64xf32> to vector<2x4xf32>
    %c0_10 = arith.constant 0 : index
    %c0_11 = arith.constant 0 : index
    %c1 = arith.constant 1 : index
    %20 = arith.index_cast %c0_i32 : i32 to index
    %c0_12 = arith.constant 0 : index
    %c0_13 = arith.constant 0 : index
    %21 = vector.load %arg5[%c0_10, %c0_11, %c1, %20, %c0_12, %c0_13] : memref<1x4x4x1x2x4xf32, #tpu.memory_space<vmem>>, vector<1x1x1x1x2x4xf32>
    %22 = vector.shape_cast %21 : vector<1x1x1x1x2x4xf32> to vector<2x4xf32>
    %23 = vector.shape_cast %19 : vector<2x4xf32> to vector<1x1x1x1x2x4xf32>
    tpu.vector_store %arg5[%c0_10, %c0_11, %c1, %20, %c0_12, %c0_13], %23 {strides = array<i32>} : memref<1x4x4x1x2x4xf32, #tpu.memory_space<vmem>>, vector<1x1x1x1x2x4xf32>,
    %24 = vector.extract_strided_slice %13 {offsets = [0, 8], sizes = [2, 4], strides = [1, 1]} : vector<2x64xf32> to vector<2x4xf32>
    %c0_14 = arith.constant 0 : index
    %c0_15 = arith.constant 0 : index
    %c2 = arith.constant 2 : index
    %25 = arith.index_cast %c0_i32 : i32 to index
    %c0_16 = arith.constant 0 : index
    %c0_17 = arith.constant 0 : index
    %26 = vector.load %arg5[%c0_14, %c0_15, %c2, %25, %c0_16, %c0_17] : memref<1x4x4x1x2x4xf32, #tpu.memory_space<vmem>>, vector<1x1x1x1x2x4xf32>
    %27 = vector.shape_cast %26 : vector<1x1x1x1x2x4xf32> to vector<2x4xf32>
    %28 = vector.shape_cast %24 : vector<2x4xf32> to vector<1x1x1x1x2x4xf32>
    tpu.vector_store %arg5[%c0_14, %c0_15, %c2, %25, %c0_16, %c0_17], %28 {strides = array<i32>} : memref<1x4x4x1x2x4xf32, #tpu.memory_space<vmem>>, vector<1x1x1x1x2x4xf32>,
    %29 = vector.extract_strided_slice %13 {offsets = [0, 12], sizes = [2, 4], strides = [1, 1]} : vector<2x64xf32> to vector<2x4xf32>
    %c0_18 = arith.constant 0 : index
    %c0_19 = arith.constant 0 : index
    %c3 = arith.constant 3 : index
    %30 = arith.index_cast %c0_i32 : i32 to index
    %c0_20 = arith.constant 0 : index
    %c0_21 = arith.constant 0 : index
    %31 = vector.load %arg5[%c0_18, %c0_19, %c3, %30, %c0_20, %c0_21] : memref<1x4x4x1x2x4xf32, #tpu.memory_space<vmem>>, vector<1x1x1x1x2x4xf32>
    %32 = vector.shape_cast %31 : vector<1x1x1x1x2x4xf32> to vector<2x4xf32>
    %33 = vector.shape_cast %29 : vector<2x4xf32> to vector<1x1x1x1x2x4xf32>
    tpu.vector_store %arg5[%c0_18, %c0_19, %c3, %30, %c0_20, %c0_21], %33 {strides = array<i32>} : memref<1x4x4x1x2x4xf32, #tpu.memory_space<vmem>>, vector<1x1x1x1x2x4xf32>,
    %34 = vector.extract_strided_slice %13 {offsets = [0, 16], sizes = [2, 4], strides = [1, 1]} : vector<2x64xf32> to vector<2x4xf32>
    %c0_22 = arith.constant 0 : index
    %c1_23 = arith.constant 1 : index
    %c0_24 = arith.constant 0 : index
    %35 = arith.index_cast %c0_i32 : i32 to index
    %c0_25 = arith.constant 0 : index
    %c0_26 = arith.constant 0 : index
    %36 = vector.load %arg5[%c0_22, %c1_23, %c0_24, %35, %c0_25, %c0_26] : memref<1x4x4x1x2x4xf32, #tpu.memory_space<vmem>>, vector<1x1x1x1x2x4xf32>
    %37 = vector.shape_cast %36 : vector<1x1x1x1x2x4xf32> to vector<2x4xf32>
    %38 = vector.shape_cast %34 : vector<2x4xf32> to vector<1x1x1x1x2x4xf32>
    tpu.vector_store %arg5[%c0_22, %c1_23, %c0_24, %35, %c0_25, %c0_26], %38 {strides = array<i32>} : memref<1x4x4x1x2x4xf32, #tpu.memory_space<vmem>>, vector<1x1x1x1x2x4xf32>,
    %39 = vector.extract_strided_slice %13 {offsets = [0, 20], sizes = [2, 4], strides = [1, 1]} : vector<2x64xf32> to vector<2x4xf32>
    %c0_27 = arith.constant 0 : index
    %c1_28 = arith.constant 1 : index
    %c1_29 = arith.constant 1 : index
    %40 = arith.index_cast %c0_i32 : i32 to index
    %c0_30 = arith.constant 0 : index
    %c0_31 = arith.constant 0 : index
    %41 = vector.load %arg5[%c0_27, %c1_28, %c1_29, %40, %c0_30, %c0_31] : memref<1x4x4x1x2x4xf32, #tpu.memory_space<vmem>>, vector<1x1x1x1x2x4xf32>
    %42 = vector.shape_cast %41 : vector<1x1x1x1x2x4xf32> to vector<2x4xf32>
    %43 = vector.shape_cast %39 : vector<2x4xf32> to vector<1x1x1x1x2x4xf32>
    tpu.vector_store %arg5[%c0_27, %c1_28, %c1_29, %40, %c0_30, %c0_31], %43 {strides = array<i32>} : memref<1x4x4x1x2x4xf32, #tpu.memory_space<vmem>>, vector<1x1x1x1x2x4xf32>,
    %44 = vector.extract_strided_slice %13 {offsets = [0, 24], sizes = [2, 4], strides = [1, 1]} : vector<2x64xf32> to vector<2x4xf32>
    %c0_32 = arith.constant 0 : index
    %c1_33 = arith.constant 1 : index
    %c2_34 = arith.constant 2 : index
    %45 = arith.index_cast %c0_i32 : i32 to index
    %c0_35 = arith.constant 0 : index
    %c0_36 = arith.constant 0 : index
    %46 = vector.load %arg5[%c0_32, %c1_33, %c2_34, %45, %c0_35, %c0_36] : memref<1x4x4x1x2x4xf32, #tpu.memory_space<vmem>>, vector<1x1x1x1x2x4xf32>
    %47 = vector.shape_cast %46 : vector<1x1x1x1x2x4xf32> to vector<2x4xf32>
    %48 = vector.shape_cast %44 : vector<2x4xf32> to vector<1x1x1x1x2x4xf32>
    tpu.vector_store %arg5[%c0_32, %c1_33, %c2_34, %45, %c0_35, %c0_36], %48 {strides = array<i32>} : memref<1x4x4x1x2x4xf32, #tpu.memory_space<vmem>>, vector<1x1x1x1x2x4xf32>,
    %49 = vector.extract_strided_slice %13 {offsets = [0, 28], sizes = [2, 4], strides = [1, 1]} : vector<2x64xf32> to vector<2x4xf32>
    %c0_37 = arith.constant 0 : index
    %c1_38 = arith.constant 1 : index
    %c3_39 = arith.constant 3 : index
    %50 = arith.index_cast %c0_i32 : i32 to index
    %c0_40 = arith.constant 0 : index
    %c0_41 = arith.constant 0 : index
    %51 = vector.load %arg5[%c0_37, %c1_38, %c3_39, %50, %c0_40, %c0_41] : memref<1x4x4x1x2x4xf32, #tpu.memory_space<vmem>>, vector<1x1x1x1x2x4xf32>
    %52 = vector.shape_cast %51 : vector<1x1x1x1x2x4xf32> to vector<2x4xf32>
    %53 = vector.shape_cast %49 : vector<2x4xf32> to vector<1x1x1x1x2x4xf32>
    tpu.vector_store %arg5[%c0_37, %c1_38, %c3_39, %50, %c0_40, %c0_41], %53 {strides = array<i32>} : memref<1x4x4x1x2x4xf32, #tpu.memory_space<vmem>>, vector<1x1x1x1x2x4xf32>,
    %54 = vector.extract_strided_slice %13 {offsets = [0, 32], sizes = [2, 4], strides = [1, 1]} : vector<2x64xf32> to vector<2x4xf32>
    %c0_42 = arith.constant 0 : index
    %c2_43 = arith.constant 2 : index
    %c0_44 = arith.constant 0 : index
    %55 = arith.index_cast %c0_i32 : i32 to index
    %c0_45 = arith.constant 0 : index
    %c0_46 = arith.constant 0 : index
    %56 = vector.load %arg5[%c0_42, %c2_43, %c0_44, %55, %c0_45, %c0_46] : memref<1x4x4x1x2x4xf32, #tpu.memory_space<vmem>>, vector<1x1x1x1x2x4xf32>
    %57 = vector.shape_cast %56 : vector<1x1x1x1x2x4xf32> to vector<2x4xf32>
    %58 = vector.shape_cast %54 : vector<2x4xf32> to vector<1x1x1x1x2x4xf32>
    tpu.vector_store %arg5[%c0_42, %c2_43, %c0_44, %55, %c0_45, %c0_46], %58 {strides = array<i32>} : memref<1x4x4x1x2x4xf32, #tpu.memory_space<vmem>>, vector<1x1x1x1x2x4xf32>,
    %59 = vector.extract_strided_slice %13 {offsets = [0, 36], sizes = [2, 4], strides = [1, 1]} : vector<2x64xf32> to vector<2x4xf32>
    %c0_47 = arith.constant 0 : index
    %c2_48 = arith.constant 2 : index
    %c1_49 = arith.constant 1 : index
    %60 = arith.index_cast %c0_i32 : i32 to index
    %c0_50 = arith.constant 0 : index
    %c0_51 = arith.constant 0 : index
    %61 = vector.load %arg5[%c0_47, %c2_48, %c1_49, %60, %c0_50, %c0_51] : memref<1x4x4x1x2x4xf32, #tpu.memory_space<vmem>>, vector<1x1x1x1x2x4xf32>
    %62 = vector.shape_cast %61 : vector<1x1x1x1x2x4xf32> to vector<2x4xf32>
    %63 = vector.shape_cast %59 : vector<2x4xf32> to vector<1x1x1x1x2x4xf32>
    tpu.vector_store %arg5[%c0_47, %c2_48, %c1_49, %60, %c0_50, %c0_51], %63 {strides = array<i32>} : memref<1x4x4x1x2x4xf32, #tpu.memory_space<vmem>>, vector<1x1x1x1x2x4xf32>,
    %64 = vector.extract_strided_slice %13 {offsets = [0, 40], sizes = [2, 4], strides = [1, 1]} : vector<2x64xf32> to vector<2x4xf32>
    %c0_52 = arith.constant 0 : index
    %c2_53 = arith.constant 2 : index
    %c2_54 = arith.constant 2 : index
    %65 = arith.index_cast %c0_i32 : i32 to index
    %c0_55 = arith.constant 0 : index
    %c0_56 = arith.constant 0 : index
    %66 = vector.load %arg5[%c0_52, %c2_53, %c2_54, %65, %c0_55, %c0_56] : memref<1x4x4x1x2x4xf32, #tpu.memory_space<vmem>>, vector<1x1x1x1x2x4xf32>
    %67 = vector.shape_cast %66 : vector<1x1x1x1x2x4xf32> to vector<2x4xf32>
    %68 = vector.shape_cast %64 : vector<2x4xf32> to vector<1x1x1x1x2x4xf32>
    tpu.vector_store %arg5[%c0_52, %c2_53, %c2_54, %65, %c0_55, %c0_56], %68 {strides = array<i32>} : memref<1x4x4x1x2x4xf32, #tpu.memory_space<vmem>>, vector<1x1x1x1x2x4xf32>,
    %69 = vector.extract_strided_slice %13 {offsets = [0, 44], sizes = [2, 4], strides = [1, 1]} : vector<2x64xf32> to vector<2x4xf32>
    %c0_57 = arith.constant 0 : index
    %c2_58 = arith.constant 2 : index
    %c3_59 = arith.constant 3 : index
    %70 = arith.index_cast %c0_i32 : i32 to index
    %c0_60 = arith.constant 0 : index
    %c0_61 = arith.constant 0 : index
    %71 = vector.load %arg5[%c0_57, %c2_58, %c3_59, %70, %c0_60, %c0_61] : memref<1x4x4x1x2x4xf32, #tpu.memory_space<vmem>>, vector<1x1x1x1x2x4xf32>
    %72 = vector.shape_cast %71 : vector<1x1x1x1x2x4xf32> to vector<2x4xf32>
    %73 = vector.shape_cast %69 : vector<2x4xf32> to vector<1x1x1x1x2x4xf32>
    tpu.vector_store %arg5[%c0_57, %c2_58, %c3_59, %70, %c0_60, %c0_61], %73 {strides = array<i32>} : memref<1x4x4x1x2x4xf32, #tpu.memory_space<vmem>>, vector<1x1x1x1x2x4xf32>,
    %74 = vector.extract_strided_slice %13 {offsets = [0, 48], sizes = [2, 4], strides = [1, 1]} : vector<2x64xf32> to vector<2x4xf32>
    %c0_62 = arith.constant 0 : index
    %c3_63 = arith.constant 3 : index
    %c0_64 = arith.constant 0 : index
    %75 = arith.index_cast %c0_i32 : i32 to index
    %c0_65 = arith.constant 0 : index
    %c0_66 = arith.constant 0 : index
    %76 = vector.load %arg5[%c0_62, %c3_63, %c0_64, %75, %c0_65, %c0_66] : memref<1x4x4x1x2x4xf32, #tpu.memory_space<vmem>>, vector<1x1x1x1x2x4xf32>
    %77 = vector.shape_cast %76 : vector<1x1x1x1x2x4xf32> to vector<2x4xf32>
    %78 = vector.shape_cast %74 : vector<2x4xf32> to vector<1x1x1x1x2x4xf32>
    tpu.vector_store %arg5[%c0_62, %c3_63, %c0_64, %75, %c0_65, %c0_66], %78 {strides = array<i32>} : memref<1x4x4x1x2x4xf32, #tpu.memory_space<vmem>>, vector<1x1x1x1x2x4xf32>,
    %79 = vector.extract_strided_slice %13 {offsets = [0, 52], sizes = [2, 4], strides = [1, 1]} : vector<2x64xf32> to vector<2x4xf32>
    %c0_67 = arith.constant 0 : index
    %c3_68 = arith.constant 3 : index
    %c1_69 = arith.constant 1 : index
    %80 = arith.index_cast %c0_i32 : i32 to index
    %c0_70 = arith.constant 0 : index
    %c0_71 = arith.constant 0 : index
    %81 = vector.load %arg5[%c0_67, %c3_68, %c1_69, %80, %c0_70, %c0_71] : memref<1x4x4x1x2x4xf32, #tpu.memory_space<vmem>>, vector<1x1x1x1x2x4xf32>
    %82 = vector.shape_cast %81 : vector<1x1x1x1x2x4xf32> to vector<2x4xf32>
    %83 = vector.shape_cast %79 : vector<2x4xf32> to vector<1x1x1x1x2x4xf32>
    tpu.vector_store %arg5[%c0_67, %c3_68, %c1_69, %80, %c0_70, %c0_71], %83 {strides = array<i32>} : memref<1x4x4x1x2x4xf32, #tpu.memory_space<vmem>>, vector<1x1x1x1x2x4xf32>,
    %84 = vector.extract_strided_slice %13 {offsets = [0, 56], sizes = [2, 4], strides = [1, 1]} : vector<2x64xf32> to vector<2x4xf32>
    %c0_72 = arith.constant 0 : index
    %c3_73 = arith.constant 3 : index
    %c2_74 = arith.constant 2 : index
    %85 = arith.index_cast %c0_i32 : i32 to index
    %c0_75 = arith.constant 0 : index
    %c0_76 = arith.constant 0 : index
    %86 = vector.load %arg5[%c0_72, %c3_73, %c2_74, %85, %c0_75, %c0_76] : memref<1x4x4x1x2x4xf32, #tpu.memory_space<vmem>>, vector<1x1x1x1x2x4xf32>
    %87 = vector.shape_cast %86 : vector<1x1x1x1x2x4xf32> to vector<2x4xf32>
    %88 = vector.shape_cast %84 : vector<2x4xf32> to vector<1x1x1x1x2x4xf32>
    tpu.vector_store %arg5[%c0_72, %c3_73, %c2_74, %85, %c0_75, %c0_76], %88 {strides = array<i32>} : memref<1x4x4x1x2x4xf32, #tpu.memory_space<vmem>>, vector<1x1x1x1x2x4xf32>,
    %89 = vector.extract_strided_slice %13 {offsets = [0, 60], sizes = [2, 4], strides = [1, 1]} : vector<2x64xf32> to vector<2x4xf32>
    %c0_77 = arith.constant 0 : index
    %c3_78 = arith.constant 3 : index
    %c3_79 = arith.constant 3 : index
    %90 = arith.index_cast %c0_i32 : i32 to index
    %c0_80 = arith.constant 0 : index
    %c0_81 = arith.constant 0 : index
    %91 = vector.load %arg5[%c0_77, %c3_78, %c3_79, %90, %c0_80, %c0_81] : memref<1x4x4x1x2x4xf32, #tpu.memory_space<vmem>>, vector<1x1x1x1x2x4xf32>
    %92 = vector.shape_cast %91 : vector<1x1x1x1x2x4xf32> to vector<2x4xf32>
    %93 = vector.shape_cast %89 : vector<2x4xf32> to vector<1x1x1x1x2x4xf32>
    tpu.vector_store %arg5[%c0_77, %c3_78, %c3_79, %90, %c0_80, %c0_81], %93 {strides = array<i32>} : memref<1x4x4x1x2x4xf32, #tpu.memory_space<vmem>>, vector<1x1x1x1x2x4xf32>,
    %c1_i32 = arith.constant 1 : i32
    return
  }
  func.func @transform_0(%arg0: i32, %arg1: i32, %arg2: i32) -> (i32, i32) {
    %c0_i32 = arith.constant 0 : i32
    %c0_i32_0 = arith.constant 0 : i32
    %c0_i32_1 = arith.constant 0 : i32
    return %c0_i32, %c0_i32_0 : i32, i32
  }
  func.func @transform_1(%arg0: i32, %arg1: i32, %arg2: i32) -> (i32, i32, i32, i32) {
    %c0_i32 = arith.constant 0 : i32
    %c0_i32_0 = arith.constant 0 : i32
    return %arg0, %arg1, %arg2, %c0_i32 : i32, i32, i32, i32
  }
  func.func @transform_2(%arg0: i32, %arg1: i32, %arg2: i32) -> (i32, i32, i32, i32, i32, i32) {
    %c0_i32 = arith.constant 0 : i32
    %c0_i32_0 = arith.constant 0 : i32
    %c0_i32_1 = arith.constant 0 : i32
    %c0_i32_2 = arith.constant 0 : i32
    return %arg0, %c0_i32, %c0_i32_0, %arg1, %arg2, %c0_i32_1 : i32, i32, i32, i32, i32, i32
  }
}

module attributes {stable_mosaic.version = 11 : i64} {
  func.func @_s2d_matmul_kernel(%arg0: i32, %arg1: i32, %arg2: i32, %arg3: memref<16x16xbf16, #tpu.memory_space<vmem>>, %arg4: memref<1x4x4x64xf32, #tpu.memory_space<vmem>>, %arg5: memref<1x4x4x4x4x4xf32, #tpu.memory_space<vmem>>) attributes {dimension_semantics = [#tpu.dimension_semantics<parallel>, #tpu.dimension_semantics<parallel>, #tpu.dimension_semantics<parallel>], iteration_bounds = array<i64: 2, 1, 1>, scalar_prefetch = 0 : i64, scratch_operands = 0 : i64, tpu.core_type = #tpu.core_type<tc>, window_params = [{pipeline_mode = #tpu.pipeline_mode<synchronous>, transform_indices = @transform_0, window_bounds = array<i64: 16, 16>}, {transform_indices = @transform_1, window_bounds = array<i64: 1, 4, 4, 64>}, {transform_indices = @transform_2, window_bounds = array<i64: 1, 4, 4, 4, 4, 4>}]} {
    %c0 = arith.constant 0 : index
    %c0_0 = arith.constant 0 : index
    %0 = vector.load %arg3[%c0, %c0_0] : memref<16x16xbf16, #tpu.memory_space<vmem>>, vector<16x16xbf16>
    %c0_i32 = arith.constant 0 : i32
    %c4_i32 = arith.constant 4 : i32
    %1 = arith.addi %c0_i32, %c4_i32 : i32
    %c1_i32 = arith.constant 1 : i32
    scf.for %arg6 = %c0_i32 to %1 step %c1_i32  : i32 {
      %c0_2 = arith.constant 0 : index
      %2 = arith.index_cast %arg6 : i32 to index
      %c0_3 = arith.constant 0 : index
      %c0_4 = arith.constant 0 : index
      %3 = vector.load %arg4[%c0_2, %2, %c0_3, %c0_4] : memref<1x4x4x64xf32, #tpu.memory_space<vmem>>, vector<1x1x4x64xf32>
      %4 = vector.shape_cast %3 : vector<1x1x4x64xf32> to vector<4x64xf32>
      %5 = vector.extract_strided_slice %4 {offsets = [0, 0], sizes = [4, 16], strides = [1, 1]} : vector<4x64xf32> to vector<4x16xf32>
      %6 = arith.truncf %5 : vector<4x16xf32> to vector<4x16xbf16>
      %7 = arith.extf %6 : vector<4x16xbf16> to vector<4x16xf32>
      %8 = arith.subf %5, %7 : vector<4x16xf32>
      %9 = arith.truncf %8 : vector<4x16xf32> to vector<4x16xbf16>
      %10 = arith.extf %9 : vector<4x16xbf16> to vector<4x16xf32>
      %11 = arith.subf %8, %10 : vector<4x16xf32>
      %12 = arith.truncf %11 : vector<4x16xf32> to vector<4x16xbf16>
      %cst = arith.constant dense<0.000000e+00> : vector<4x16xf32>
      %13 = tpu.matmul %6, %0, %cst {dimension_numbers = #tpu.dot_dimension_numbers<[1], [0], [0], [1], [0, 0, 1, 1], [], []>} : vector<4x16xbf16>, vector<16x16xbf16>, vector<4x16xf32> -> vector<4x16xf32>
      %cst_5 = arith.constant dense<0.000000e+00> : vector<4x16xf32>
      %14 = tpu.matmul %9, %0, %cst_5 {dimension_numbers = #tpu.dot_dimension_numbers<[1], [0], [0], [1], [0, 0, 1, 1], [], []>} : vector<4x16xbf16>, vector<16x16xbf16>, vector<4x16xf32> -> vector<4x16xf32>
      %15 = arith.addf %13, %14 : vector<4x16xf32>
      %cst_6 = arith.constant dense<0.000000e+00> : vector<4x16xf32>
      %16 = tpu.matmul %12, %0, %cst_6 {dimension_numbers = #tpu.dot_dimension_numbers<[1], [0], [0], [1], [0, 0, 1, 1], [], []>} : vector<4x16xbf16>, vector<16x16xbf16>, vector<4x16xf32> -> vector<4x16xf32>
      %17 = arith.addf %15, %16 : vector<4x16xf32>
      %18 = vector.extract_strided_slice %17 {offsets = [0, 0], sizes = [4, 4], strides = [1, 1]} : vector<4x16xf32> to vector<4x4xf32>
      %c0_7 = arith.constant 0 : index
      %c0_8 = arith.constant 0 : index
      %c0_9 = arith.constant 0 : index
      %19 = arith.index_cast %arg6 : i32 to index
      %c0_10 = arith.constant 0 : index
      %c0_11 = arith.constant 0 : index
      %20 = vector.load %arg5[%c0_7, %c0_8, %c0_9, %19, %c0_10, %c0_11] : memref<1x4x4x4x4x4xf32, #tpu.memory_space<vmem>>, vector<1x1x1x1x4x4xf32>
      %21 = vector.shape_cast %20 : vector<1x1x1x1x4x4xf32> to vector<4x4xf32>
      %22 = vector.shape_cast %18 : vector<4x4xf32> to vector<1x1x1x1x4x4xf32>
      tpu.vector_store %arg5[%c0_7, %c0_8, %c0_9, %19, %c0_10, %c0_11], %22 {strides = array<i32>} : memref<1x4x4x4x4x4xf32, #tpu.memory_space<vmem>>, vector<1x1x1x1x4x4xf32>,
      %23 = vector.extract_strided_slice %17 {offsets = [0, 4], sizes = [4, 4], strides = [1, 1]} : vector<4x16xf32> to vector<4x4xf32>
      %c0_12 = arith.constant 0 : index
      %c0_13 = arith.constant 0 : index
      %c1 = arith.constant 1 : index
      %24 = arith.index_cast %arg6 : i32 to index
      %c0_14 = arith.constant 0 : index
      %c0_15 = arith.constant 0 : index
      %25 = vector.load %arg5[%c0_12, %c0_13, %c1, %24, %c0_14, %c0_15] : memref<1x4x4x4x4x4xf32, #tpu.memory_space<vmem>>, vector<1x1x1x1x4x4xf32>
      %26 = vector.shape_cast %25 : vector<1x1x1x1x4x4xf32> to vector<4x4xf32>
      %27 = vector.shape_cast %23 : vector<4x4xf32> to vector<1x1x1x1x4x4xf32>
      tpu.vector_store %arg5[%c0_12, %c0_13, %c1, %24, %c0_14, %c0_15], %27 {strides = array<i32>} : memref<1x4x4x4x4x4xf32, #tpu.memory_space<vmem>>, vector<1x1x1x1x4x4xf32>,
      %28 = vector.extract_strided_slice %17 {offsets = [0, 8], sizes = [4, 4], strides = [1, 1]} : vector<4x16xf32> to vector<4x4xf32>
      %c0_16 = arith.constant 0 : index
      %c0_17 = arith.constant 0 : index
      %c2 = arith.constant 2 : index
      %29 = arith.index_cast %arg6 : i32 to index
      %c0_18 = arith.constant 0 : index
      %c0_19 = arith.constant 0 : index
      %30 = vector.load %arg5[%c0_16, %c0_17, %c2, %29, %c0_18, %c0_19] : memref<1x4x4x4x4x4xf32, #tpu.memory_space<vmem>>, vector<1x1x1x1x4x4xf32>
      %31 = vector.shape_cast %30 : vector<1x1x1x1x4x4xf32> to vector<4x4xf32>
      %32 = vector.shape_cast %28 : vector<4x4xf32> to vector<1x1x1x1x4x4xf32>
      tpu.vector_store %arg5[%c0_16, %c0_17, %c2, %29, %c0_18, %c0_19], %32 {strides = array<i32>} : memref<1x4x4x4x4x4xf32, #tpu.memory_space<vmem>>, vector<1x1x1x1x4x4xf32>,
      %33 = vector.extract_strided_slice %17 {offsets = [0, 12], sizes = [4, 4], strides = [1, 1]} : vector<4x16xf32> to vector<4x4xf32>
      %c0_20 = arith.constant 0 : index
      %c0_21 = arith.constant 0 : index
      %c3 = arith.constant 3 : index
      %34 = arith.index_cast %arg6 : i32 to index
      %c0_22 = arith.constant 0 : index
      %c0_23 = arith.constant 0 : index
      %35 = vector.load %arg5[%c0_20, %c0_21, %c3, %34, %c0_22, %c0_23] : memref<1x4x4x4x4x4xf32, #tpu.memory_space<vmem>>, vector<1x1x1x1x4x4xf32>
      %36 = vector.shape_cast %35 : vector<1x1x1x1x4x4xf32> to vector<4x4xf32>
      %37 = vector.shape_cast %33 : vector<4x4xf32> to vector<1x1x1x1x4x4xf32>
      tpu.vector_store %arg5[%c0_20, %c0_21, %c3, %34, %c0_22, %c0_23], %37 {strides = array<i32>} : memref<1x4x4x4x4x4xf32, #tpu.memory_space<vmem>>, vector<1x1x1x1x4x4xf32>,
      %38 = vector.extract_strided_slice %4 {offsets = [0, 16], sizes = [4, 16], strides = [1, 1]} : vector<4x64xf32> to vector<4x16xf32>
      %39 = arith.truncf %38 : vector<4x16xf32> to vector<4x16xbf16>
      %40 = arith.extf %39 : vector<4x16xbf16> to vector<4x16xf32>
      %41 = arith.subf %38, %40 : vector<4x16xf32>
      %42 = arith.truncf %41 : vector<4x16xf32> to vector<4x16xbf16>
      %43 = arith.extf %42 : vector<4x16xbf16> to vector<4x16xf32>
      %44 = arith.subf %41, %43 : vector<4x16xf32>
      %45 = arith.truncf %44 : vector<4x16xf32> to vector<4x16xbf16>
      %cst_24 = arith.constant dense<0.000000e+00> : vector<4x16xf32>
      %46 = tpu.matmul %39, %0, %cst_24 {dimension_numbers = #tpu.dot_dimension_numbers<[1], [0], [0], [1], [0, 0, 1, 1], [], []>} : vector<4x16xbf16>, vector<16x16xbf16>, vector<4x16xf32> -> vector<4x16xf32>
      %cst_25 = arith.constant dense<0.000000e+00> : vector<4x16xf32>
      %47 = tpu.matmul %42, %0, %cst_25 {dimension_numbers = #tpu.dot_dimension_numbers<[1], [0], [0], [1], [0, 0, 1, 1], [], []>} : vector<4x16xbf16>, vector<16x16xbf16>, vector<4x16xf32> -> vector<4x16xf32>
      %48 = arith.addf %46, %47 : vector<4x16xf32>
      %cst_26 = arith.constant dense<0.000000e+00> : vector<4x16xf32>
      %49 = tpu.matmul %45, %0, %cst_26 {dimension_numbers = #tpu.dot_dimension_numbers<[1], [0], [0], [1], [0, 0, 1, 1], [], []>} : vector<4x16xbf16>, vector<16x16xbf16>, vector<4x16xf32> -> vector<4x16xf32>
      %50 = arith.addf %48, %49 : vector<4x16xf32>
      %51 = vector.extract_strided_slice %50 {offsets = [0, 0], sizes = [4, 4], strides = [1, 1]} : vector<4x16xf32> to vector<4x4xf32>
      %c0_27 = arith.constant 0 : index
      %c1_28 = arith.constant 1 : index
      %c0_29 = arith.constant 0 : index
      %52 = arith.index_cast %arg6 : i32 to index
      %c0_30 = arith.constant 0 : index
      %c0_31 = arith.constant 0 : index
      %53 = vector.load %arg5[%c0_27, %c1_28, %c0_29, %52, %c0_30, %c0_31] : memref<1x4x4x4x4x4xf32, #tpu.memory_space<vmem>>, vector<1x1x1x1x4x4xf32>
      %54 = vector.shape_cast %53 : vector<1x1x1x1x4x4xf32> to vector<4x4xf32>
      %55 = vector.shape_cast %51 : vector<4x4xf32> to vector<1x1x1x1x4x4xf32>
      tpu.vector_store %arg5[%c0_27, %c1_28, %c0_29, %52, %c0_30, %c0_31], %55 {strides = array<i32>} : memref<1x4x4x4x4x4xf32, #tpu.memory_space<vmem>>, vector<1x1x1x1x4x4xf32>,
      %56 = vector.extract_strided_slice %50 {offsets = [0, 4], sizes = [4, 4], strides = [1, 1]} : vector<4x16xf32> to vector<4x4xf32>
      %c0_32 = arith.constant 0 : index
      %c1_33 = arith.constant 1 : index
      %c1_34 = arith.constant 1 : index
      %57 = arith.index_cast %arg6 : i32 to index
      %c0_35 = arith.constant 0 : index
      %c0_36 = arith.constant 0 : index
      %58 = vector.load %arg5[%c0_32, %c1_33, %c1_34, %57, %c0_35, %c0_36] : memref<1x4x4x4x4x4xf32, #tpu.memory_space<vmem>>, vector<1x1x1x1x4x4xf32>
      %59 = vector.shape_cast %58 : vector<1x1x1x1x4x4xf32> to vector<4x4xf32>
      %60 = vector.shape_cast %56 : vector<4x4xf32> to vector<1x1x1x1x4x4xf32>
      tpu.vector_store %arg5[%c0_32, %c1_33, %c1_34, %57, %c0_35, %c0_36], %60 {strides = array<i32>} : memref<1x4x4x4x4x4xf32, #tpu.memory_space<vmem>>, vector<1x1x1x1x4x4xf32>,
      %61 = vector.extract_strided_slice %50 {offsets = [0, 8], sizes = [4, 4], strides = [1, 1]} : vector<4x16xf32> to vector<4x4xf32>
      %c0_37 = arith.constant 0 : index
      %c1_38 = arith.constant 1 : index
      %c2_39 = arith.constant 2 : index
      %62 = arith.index_cast %arg6 : i32 to index
      %c0_40 = arith.constant 0 : index
      %c0_41 = arith.constant 0 : index
      %63 = vector.load %arg5[%c0_37, %c1_38, %c2_39, %62, %c0_40, %c0_41] : memref<1x4x4x4x4x4xf32, #tpu.memory_space<vmem>>, vector<1x1x1x1x4x4xf32>
      %64 = vector.shape_cast %63 : vector<1x1x1x1x4x4xf32> to vector<4x4xf32>
      %65 = vector.shape_cast %61 : vector<4x4xf32> to vector<1x1x1x1x4x4xf32>
      tpu.vector_store %arg5[%c0_37, %c1_38, %c2_39, %62, %c0_40, %c0_41], %65 {strides = array<i32>} : memref<1x4x4x4x4x4xf32, #tpu.memory_space<vmem>>, vector<1x1x1x1x4x4xf32>,
      %66 = vector.extract_strided_slice %50 {offsets = [0, 12], sizes = [4, 4], strides = [1, 1]} : vector<4x16xf32> to vector<4x4xf32>
      %c0_42 = arith.constant 0 : index
      %c1_43 = arith.constant 1 : index
      %c3_44 = arith.constant 3 : index
      %67 = arith.index_cast %arg6 : i32 to index
      %c0_45 = arith.constant 0 : index
      %c0_46 = arith.constant 0 : index
      %68 = vector.load %arg5[%c0_42, %c1_43, %c3_44, %67, %c0_45, %c0_46] : memref<1x4x4x4x4x4xf32, #tpu.memory_space<vmem>>, vector<1x1x1x1x4x4xf32>
      %69 = vector.shape_cast %68 : vector<1x1x1x1x4x4xf32> to vector<4x4xf32>
      %70 = vector.shape_cast %66 : vector<4x4xf32> to vector<1x1x1x1x4x4xf32>
      tpu.vector_store %arg5[%c0_42, %c1_43, %c3_44, %67, %c0_45, %c0_46], %70 {strides = array<i32>} : memref<1x4x4x4x4x4xf32, #tpu.memory_space<vmem>>, vector<1x1x1x1x4x4xf32>,
      %71 = vector.extract_strided_slice %4 {offsets = [0, 32], sizes = [4, 16], strides = [1, 1]} : vector<4x64xf32> to vector<4x16xf32>
      %72 = arith.truncf %71 : vector<4x16xf32> to vector<4x16xbf16>
      %73 = arith.extf %72 : vector<4x16xbf16> to vector<4x16xf32>
      %74 = arith.subf %71, %73 : vector<4x16xf32>
      %75 = arith.truncf %74 : vector<4x16xf32> to vector<4x16xbf16>
      %76 = arith.extf %75 : vector<4x16xbf16> to vector<4x16xf32>
      %77 = arith.subf %74, %76 : vector<4x16xf32>
      %78 = arith.truncf %77 : vector<4x16xf32> to vector<4x16xbf16>
      %cst_47 = arith.constant dense<0.000000e+00> : vector<4x16xf32>
      %79 = tpu.matmul %72, %0, %cst_47 {dimension_numbers = #tpu.dot_dimension_numbers<[1], [0], [0], [1], [0, 0, 1, 1], [], []>} : vector<4x16xbf16>, vector<16x16xbf16>, vector<4x16xf32> -> vector<4x16xf32>
      %cst_48 = arith.constant dense<0.000000e+00> : vector<4x16xf32>
      %80 = tpu.matmul %75, %0, %cst_48 {dimension_numbers = #tpu.dot_dimension_numbers<[1], [0], [0], [1], [0, 0, 1, 1], [], []>} : vector<4x16xbf16>, vector<16x16xbf16>, vector<4x16xf32> -> vector<4x16xf32>
      %81 = arith.addf %79, %80 : vector<4x16xf32>
      %cst_49 = arith.constant dense<0.000000e+00> : vector<4x16xf32>
      %82 = tpu.matmul %78, %0, %cst_49 {dimension_numbers = #tpu.dot_dimension_numbers<[1], [0], [0], [1], [0, 0, 1, 1], [], []>} : vector<4x16xbf16>, vector<16x16xbf16>, vector<4x16xf32> -> vector<4x16xf32>
      %83 = arith.addf %81, %82 : vector<4x16xf32>
      %84 = vector.extract_strided_slice %83 {offsets = [0, 0], sizes = [4, 4], strides = [1, 1]} : vector<4x16xf32> to vector<4x4xf32>
      %c0_50 = arith.constant 0 : index
      %c2_51 = arith.constant 2 : index
      %c0_52 = arith.constant 0 : index
      %85 = arith.index_cast %arg6 : i32 to index
      %c0_53 = arith.constant 0 : index
      %c0_54 = arith.constant 0 : index
      %86 = vector.load %arg5[%c0_50, %c2_51, %c0_52, %85, %c0_53, %c0_54] : memref<1x4x4x4x4x4xf32, #tpu.memory_space<vmem>>, vector<1x1x1x1x4x4xf32>
      %87 = vector.shape_cast %86 : vector<1x1x1x1x4x4xf32> to vector<4x4xf32>
      %88 = vector.shape_cast %84 : vector<4x4xf32> to vector<1x1x1x1x4x4xf32>
      tpu.vector_store %arg5[%c0_50, %c2_51, %c0_52, %85, %c0_53, %c0_54], %88 {strides = array<i32>} : memref<1x4x4x4x4x4xf32, #tpu.memory_space<vmem>>, vector<1x1x1x1x4x4xf32>,
      %89 = vector.extract_strided_slice %83 {offsets = [0, 4], sizes = [4, 4], strides = [1, 1]} : vector<4x16xf32> to vector<4x4xf32>
      %c0_55 = arith.constant 0 : index
      %c2_56 = arith.constant 2 : index
      %c1_57 = arith.constant 1 : index
      %90 = arith.index_cast %arg6 : i32 to index
      %c0_58 = arith.constant 0 : index
      %c0_59 = arith.constant 0 : index
      %91 = vector.load %arg5[%c0_55, %c2_56, %c1_57, %90, %c0_58, %c0_59] : memref<1x4x4x4x4x4xf32, #tpu.memory_space<vmem>>, vector<1x1x1x1x4x4xf32>
      %92 = vector.shape_cast %91 : vector<1x1x1x1x4x4xf32> to vector<4x4xf32>
      %93 = vector.shape_cast %89 : vector<4x4xf32> to vector<1x1x1x1x4x4xf32>
      tpu.vector_store %arg5[%c0_55, %c2_56, %c1_57, %90, %c0_58, %c0_59], %93 {strides = array<i32>} : memref<1x4x4x4x4x4xf32, #tpu.memory_space<vmem>>, vector<1x1x1x1x4x4xf32>,
      %94 = vector.extract_strided_slice %83 {offsets = [0, 8], sizes = [4, 4], strides = [1, 1]} : vector<4x16xf32> to vector<4x4xf32>
      %c0_60 = arith.constant 0 : index
      %c2_61 = arith.constant 2 : index
      %c2_62 = arith.constant 2 : index
      %95 = arith.index_cast %arg6 : i32 to index
      %c0_63 = arith.constant 0 : index
      %c0_64 = arith.constant 0 : index
      %96 = vector.load %arg5[%c0_60, %c2_61, %c2_62, %95, %c0_63, %c0_64] : memref<1x4x4x4x4x4xf32, #tpu.memory_space<vmem>>, vector<1x1x1x1x4x4xf32>
      %97 = vector.shape_cast %96 : vector<1x1x1x1x4x4xf32> to vector<4x4xf32>
      %98 = vector.shape_cast %94 : vector<4x4xf32> to vector<1x1x1x1x4x4xf32>
      tpu.vector_store %arg5[%c0_60, %c2_61, %c2_62, %95, %c0_63, %c0_64], %98 {strides = array<i32>} : memref<1x4x4x4x4x4xf32, #tpu.memory_space<vmem>>, vector<1x1x1x1x4x4xf32>,
      %99 = vector.extract_strided_slice %83 {offsets = [0, 12], sizes = [4, 4], strides = [1, 1]} : vector<4x16xf32> to vector<4x4xf32>
      %c0_65 = arith.constant 0 : index
      %c2_66 = arith.constant 2 : index
      %c3_67 = arith.constant 3 : index
      %100 = arith.index_cast %arg6 : i32 to index
      %c0_68 = arith.constant 0 : index
      %c0_69 = arith.constant 0 : index
      %101 = vector.load %arg5[%c0_65, %c2_66, %c3_67, %100, %c0_68, %c0_69] : memref<1x4x4x4x4x4xf32, #tpu.memory_space<vmem>>, vector<1x1x1x1x4x4xf32>
      %102 = vector.shape_cast %101 : vector<1x1x1x1x4x4xf32> to vector<4x4xf32>
      %103 = vector.shape_cast %99 : vector<4x4xf32> to vector<1x1x1x1x4x4xf32>
      tpu.vector_store %arg5[%c0_65, %c2_66, %c3_67, %100, %c0_68, %c0_69], %103 {strides = array<i32>} : memref<1x4x4x4x4x4xf32, #tpu.memory_space<vmem>>, vector<1x1x1x1x4x4xf32>,
      %104 = vector.extract_strided_slice %4 {offsets = [0, 48], sizes = [4, 16], strides = [1, 1]} : vector<4x64xf32> to vector<4x16xf32>
      %105 = arith.truncf %104 : vector<4x16xf32> to vector<4x16xbf16>
      %106 = arith.extf %105 : vector<4x16xbf16> to vector<4x16xf32>
      %107 = arith.subf %104, %106 : vector<4x16xf32>
      %108 = arith.truncf %107 : vector<4x16xf32> to vector<4x16xbf16>
      %109 = arith.extf %108 : vector<4x16xbf16> to vector<4x16xf32>
      %110 = arith.subf %107, %109 : vector<4x16xf32>
      %111 = arith.truncf %110 : vector<4x16xf32> to vector<4x16xbf16>
      %cst_70 = arith.constant dense<0.000000e+00> : vector<4x16xf32>
      %112 = tpu.matmul %105, %0, %cst_70 {dimension_numbers = #tpu.dot_dimension_numbers<[1], [0], [0], [1], [0, 0, 1, 1], [], []>} : vector<4x16xbf16>, vector<16x16xbf16>, vector<4x16xf32> -> vector<4x16xf32>
      %cst_71 = arith.constant dense<0.000000e+00> : vector<4x16xf32>
      %113 = tpu.matmul %108, %0, %cst_71 {dimension_numbers = #tpu.dot_dimension_numbers<[1], [0], [0], [1], [0, 0, 1, 1], [], []>} : vector<4x16xbf16>, vector<16x16xbf16>, vector<4x16xf32> -> vector<4x16xf32>
      %114 = arith.addf %112, %113 : vector<4x16xf32>
      %cst_72 = arith.constant dense<0.000000e+00> : vector<4x16xf32>
      %115 = tpu.matmul %111, %0, %cst_72 {dimension_numbers = #tpu.dot_dimension_numbers<[1], [0], [0], [1], [0, 0, 1, 1], [], []>} : vector<4x16xbf16>, vector<16x16xbf16>, vector<4x16xf32> -> vector<4x16xf32>
      %116 = arith.addf %114, %115 : vector<4x16xf32>
      %117 = vector.extract_strided_slice %116 {offsets = [0, 0], sizes = [4, 4], strides = [1, 1]} : vector<4x16xf32> to vector<4x4xf32>
      %c0_73 = arith.constant 0 : index
      %c3_74 = arith.constant 3 : index
      %c0_75 = arith.constant 0 : index
      %118 = arith.index_cast %arg6 : i32 to index
      %c0_76 = arith.constant 0 : index
      %c0_77 = arith.constant 0 : index
      %119 = vector.load %arg5[%c0_73, %c3_74, %c0_75, %118, %c0_76, %c0_77] : memref<1x4x4x4x4x4xf32, #tpu.memory_space<vmem>>, vector<1x1x1x1x4x4xf32>
      %120 = vector.shape_cast %119 : vector<1x1x1x1x4x4xf32> to vector<4x4xf32>
      %121 = vector.shape_cast %117 : vector<4x4xf32> to vector<1x1x1x1x4x4xf32>
      tpu.vector_store %arg5[%c0_73, %c3_74, %c0_75, %118, %c0_76, %c0_77], %121 {strides = array<i32>} : memref<1x4x4x4x4x4xf32, #tpu.memory_space<vmem>>, vector<1x1x1x1x4x4xf32>,
      %122 = vector.extract_strided_slice %116 {offsets = [0, 4], sizes = [4, 4], strides = [1, 1]} : vector<4x16xf32> to vector<4x4xf32>
      %c0_78 = arith.constant 0 : index
      %c3_79 = arith.constant 3 : index
      %c1_80 = arith.constant 1 : index
      %123 = arith.index_cast %arg6 : i32 to index
      %c0_81 = arith.constant 0 : index
      %c0_82 = arith.constant 0 : index
      %124 = vector.load %arg5[%c0_78, %c3_79, %c1_80, %123, %c0_81, %c0_82] : memref<1x4x4x4x4x4xf32, #tpu.memory_space<vmem>>, vector<1x1x1x1x4x4xf32>
      %125 = vector.shape_cast %124 : vector<1x1x1x1x4x4xf32> to vector<4x4xf32>
      %126 = vector.shape_cast %122 : vector<4x4xf32> to vector<1x1x1x1x4x4xf32>
      tpu.vector_store %arg5[%c0_78, %c3_79, %c1_80, %123, %c0_81, %c0_82], %126 {strides = array<i32>} : memref<1x4x4x4x4x4xf32, #tpu.memory_space<vmem>>, vector<1x1x1x1x4x4xf32>,
      %127 = vector.extract_strided_slice %116 {offsets = [0, 8], sizes = [4, 4], strides = [1, 1]} : vector<4x16xf32> to vector<4x4xf32>
      %c0_83 = arith.constant 0 : index
      %c3_84 = arith.constant 3 : index
      %c2_85 = arith.constant 2 : index
      %128 = arith.index_cast %arg6 : i32 to index
      %c0_86 = arith.constant 0 : index
      %c0_87 = arith.constant 0 : index
      %129 = vector.load %arg5[%c0_83, %c3_84, %c2_85, %128, %c0_86, %c0_87] : memref<1x4x4x4x4x4xf32, #tpu.memory_space<vmem>>, vector<1x1x1x1x4x4xf32>
      %130 = vector.shape_cast %129 : vector<1x1x1x1x4x4xf32> to vector<4x4xf32>
      %131 = vector.shape_cast %127 : vector<4x4xf32> to vector<1x1x1x1x4x4xf32>
      tpu.vector_store %arg5[%c0_83, %c3_84, %c2_85, %128, %c0_86, %c0_87], %131 {strides = array<i32>} : memref<1x4x4x4x4x4xf32, #tpu.memory_space<vmem>>, vector<1x1x1x1x4x4xf32>,
      %132 = vector.extract_strided_slice %116 {offsets = [0, 12], sizes = [4, 4], strides = [1, 1]} : vector<4x16xf32> to vector<4x4xf32>
      %c0_88 = arith.constant 0 : index
      %c3_89 = arith.constant 3 : index
      %c3_90 = arith.constant 3 : index
      %133 = arith.index_cast %arg6 : i32 to index
      %c0_91 = arith.constant 0 : index
      %c0_92 = arith.constant 0 : index
      %134 = vector.load %arg5[%c0_88, %c3_89, %c3_90, %133, %c0_91, %c0_92] : memref<1x4x4x4x4x4xf32, #tpu.memory_space<vmem>>, vector<1x1x1x1x4x4xf32>
      %135 = vector.shape_cast %134 : vector<1x1x1x1x4x4xf32> to vector<4x4xf32>
      %136 = vector.shape_cast %132 : vector<4x4xf32> to vector<1x1x1x1x4x4xf32>
      tpu.vector_store %arg5[%c0_88, %c3_89, %c3_90, %133, %c0_91, %c0_92], %136 {strides = array<i32>} : memref<1x4x4x4x4x4xf32, #tpu.memory_space<vmem>>, vector<1x1x1x1x4x4xf32>,
    }
    %c4_i32_1 = arith.constant 4 : i32
    return
  }
  func.func @transform_0(%arg0: i32, %arg1: i32, %arg2: i32) -> (i32, i32) {
    %c0_i32 = arith.constant 0 : i32
    %c0_i32_0 = arith.constant 0 : i32
    %c0_i32_1 = arith.constant 0 : i32
    return %c0_i32, %c0_i32_0 : i32, i32
  }
  func.func @transform_1(%arg0: i32, %arg1: i32, %arg2: i32) -> (i32, i32, i32, i32) {
    %c0_i32 = arith.constant 0 : i32
    %c0_i32_0 = arith.constant 0 : i32
    return %arg0, %arg1, %arg2, %c0_i32 : i32, i32, i32, i32
  }
  func.func @transform_2(%arg0: i32, %arg1: i32, %arg2: i32) -> (i32, i32, i32, i32, i32, i32) {
    %c0_i32 = arith.constant 0 : i32
    %c0_i32_0 = arith.constant 0 : i32
    %c0_i32_1 = arith.constant 0 : i32
    %c0_i32_2 = arith.constant 0 : i32
    return %arg0, %c0_i32, %c0_i32_0, %arg1, %arg2, %c0_i32_1 : i32, i32, i32, i32, i32, i32
  }
}

</mosaic_0001>

<llo_original>
// kernel: tpu_custom_call.1
$region0: #{tpu_custom_call.1}
  #allocation0 [shape = 'u32[]', space=smem, size = 0x4, offset = 0x4, fixed_abs, tag = 'smem constant byte address 0x4 - core index']
  #allocation1 [shape = 'u32[144,128]{1,0:T(1,128)}', space=vmem, size = 0x12000, scoped, tag = 'internal scratch']
  %s0 = inlined_call_operand.hbm [shape: s32[1,64], index: 0, kind: input, shape index: {}]
  %s1 = inlined_call_operand.vmem [shape: f32[1,1,2,64], index: 1, kind: input, shape index: {}]
  %s2 = inlined_call_operand.hbm [shape: f32[1,4,4,1,2,4], index: 2, kind: output, shape index: {}]
  %s3 = sld [smem:[#allocation0]]
  $region22: #{tpu_custom_call.1} parent=0
    _
  %s5 = ssub.s32 1, %s3
  %s6 = scalar_select 0, %s5, %s3
  $region1: #{tpu_custom_call.1} parent=0
    #allocation2 [shape = 'u8[512]{0}', space=vmem, size = 0x400, scoped, tag = 'input window, operand 0, single buffered']
    #allocation3 [shape = 's32[1]{0}', space=sflag, size = 0x4, scoped, tag = 'scoped memory for tpu_custom_call.1']
    #allocation4 [shape = 's32[1]{0}', space=sflag, size = 0x4, scoped, tag = 'scoped memory for tpu_custom_call.1']
    #allocation5 [shape = 'u8[16384]{0}', space=vmem, size = 0x4000, scoped, tag = 'output window, operand 0, single buffered']
    %7 = vsyncpa [#allocation3], 0
    %8 = vsyncpa [#allocation4], 0
    // Predicated region
    $region2: #{tpu_custom_call.1} parent=1 // pred_check
      _
    $region3: #{tpu_custom_call.1} parent=1 // pred_check_branch
      %10 = sbr.rel (0) target = $region5
    $region4: #{tpu_custom_call.1} parent=1 // pred_region
      %s12 = ssub.s32 16, 16
      %13 = vsyncadd [#allocation3], %s12
      %s15 = sshll.u32 [#allocation2], 4
      %s16 = int_to_ptr.vmem [resolvable:$true] %s15
      %18 = dma.hbm_to_vmem [thread:$0]  %s0, 16, %s16, [#allocation3]
    $region5: #{tpu_custom_call.1} parent=1 // pred_fallthru
      _
    // Predicated region
    $region6: #{tpu_custom_call.1} parent=1 // pred_check
      _
    $region7: #{tpu_custom_call.1} parent=1 // pred_check_branch
      %20 = sbr.rel (0) target = $region9
    $region8: #{tpu_custom_call.1} parent=1 // pred_region
      _
    $region9: #{tpu_custom_call.1} parent=1 // pred_fallthru
      _
    // Predicated region
    $region10: #{tpu_custom_call.1} parent=1 // pred_check
      _
    $region11: #{tpu_custom_call.1} parent=1 // pred_check_branch
      %22 = sbr.rel (0) target = $region13
    $region12: #{tpu_custom_call.1} parent=1 // pred_region
      %23 = dma.done [#allocation3], 16
    $region13: #{tpu_custom_call.1} parent=1 // pred_fallthru
      _
    %v24 = vld [vmem:[#allocation2] sm:$0x1]
    %v25 = vlaneseq
    %v26 = vshrl.u32 %v25, 7
    %v27 = vsub.s32 0, %v26
    %v28 = vrot.slane %v24, %v27
    %v29 = vld [vmem:[%s1] sm:$0x3]
    %vm30 = vcmp.lt.s32.totalorder %v28, 0
    %v31 = vadd.s32 %v28, 64
    %v32 = vsel %vm30, %v31, %v28
    %33 = vset.pattern.permute.xlu0 %v32
    %34 = vperm.xlu0 %33, %v29
    %v35 = vpop.permute.xlu0 %34
    %vm36 = vcmask 25600
    %37 = vst.msk [vmem:[#allocation5] sm:$0x3] %vm36, %v35
    %39 = vrot.lane.b32.xlu0 %v35, 124
    %v40 = vpop.permute.xlu0 %39
    %s42 = scalar_lea.vmem [#allocation5], 2
    %43 = vst.msk [vmem:[%s42] sm:$0x3] %vm36, %v40
    %44 = vrot.lane.b32.xlu0 %v35, 120
    %v45 = vpop.permute.xlu0 %44
    %s47 = scalar_lea.vmem [#allocation5], 4
    %48 = vst.msk [vmem:[%s47] sm:$0x3] %vm36, %v45
    %49 = vrot.lane.b32.xlu0 %v35, 116
    %v50 = vpop.permute.xlu0 %49
    %s52 = scalar_lea.vmem [#allocation5], 6
    %53 = vst.msk [vmem:[%s52] sm:$0x3] %vm36, %v50
    %54 = vrot.lane.b32.xlu0 %v35, 112
    %v55 = vpop.permute.xlu0 %54
    %s57 = scalar_lea.vmem [#allocation5], 8
    %58 = vst.msk [vmem:[%s57] sm:$0x3] %vm36, %v55
    %59 = vrot.lane.b32.xlu0 %v35, 108
    %v60 = vpop.permute.xlu0 %59
    %s62 = scalar_lea.vmem [#allocation5], 10
    %63 = vst.msk [vmem:[%s62] sm:$0x3] %vm36, %v60
    %64 = vrot.lane.b32.xlu0 %v35, 104
    %v65 = vpop.permute.xlu0 %64
    %s67 = scalar_lea.vmem [#allocation5], 12
    %68 = vst.msk [vmem:[%s67] sm:$0x3] %vm36, %v65
    %69 = vrot.lane.b32.xlu0 %v35, 100
    %v70 = vpop.permute.xlu0 %69
    %s72 = scalar_lea.vmem [#allocation5], 14
    %73 = vst.msk [vmem:[%s72] sm:$0x3] %vm36, %v70
    %74 = vrot.lane.b32.xlu0 %v35, 96
    %v75 = vpop.permute.xlu0 %74
    %s77 = scalar_lea.vmem [#allocation5], 16
    %78 = vst.msk [vmem:[%s77] sm:$0x3] %vm36, %v75
    %79 = vrot.lane.b32.xlu0 %v35, 92
    %v80 = vpop.permute.xlu0 %79
    %s82 = scalar_lea.vmem [#allocation5], 18
    %83 = vst.msk [vmem:[%s82] sm:$0x3] %vm36, %v80
    %84 = vrot.lane.b32.xlu0 %v35, 88
    %v85 = vpop.permute.xlu0 %84
    %s87 = scalar_lea.vmem [#allocation5], 20
    %88 = vst.msk [vmem:[%s87] sm:$0x3] %vm36, %v85
    %89 = vrot.lane.b32.xlu0 %v35, 84
    %v90 = vpop.permute.xlu0 %89
    %s92 = scalar_lea.vmem [#allocation5], 22
    %93 = vst.msk [vmem:[%s92] sm:$0x3] %vm36, %v90
    %94 = vrot.lane.b32.xlu0 %v35, 80
    %v95 = vpop.permute.xlu0 %94
    %s97 = scalar_lea.vmem [#allocation5], 24
    %98 = vst.msk [vmem:[%s97] sm:$0x3] %vm36, %v95
    %99 = vrot.lane.b32.xlu0 %v35, 76
    %v100 = vpop.permute.xlu0 %99
    %s102 = scalar_lea.vmem [#allocation5], 26
    %103 = vst.msk [vmem:[%s102] sm:$0x3] %vm36, %v100
    %104 = vrot.lane.b32.xlu0 %v35, 72
    %v105 = vpop.permute.xlu0 %104
    %s107 = scalar_lea.vmem [#allocation5], 28
    %108 = vst.msk [vmem:[%s107] sm:$0x3] %vm36, %v105
    %109 = vrot.lane.b32.xlu0 %v35, 68
    %v110 = vpop.permute.xlu0 %109
    %s112 = scalar_lea.vmem [#allocation5], 30
    %113 = vst.msk [vmem:[%s112] sm:$0x3] %vm36, %v110
    // Predicated region
    $region14: #{tpu_custom_call.1} parent=1 // pred_check
      _
    $region15: #{tpu_custom_call.1} parent=1 // pred_check_branch
      %115 = sbr.rel (0) target = $region17
    $region16: #{tpu_custom_call.1} parent=1 // pred_region
      %s117 = ssub.s32 512, 512
      %118 = vsyncadd [#allocation4], %s117
      %s119 = sshll.u32 [#allocation5], 4
      %s120 = int_to_ptr.vmem [resolvable:$true] %s119
      %125 = dma.vmem_to_hbm [thread:$0]  %s120, 512, %s2, [#allocation4], 32, 32, 2
    $region17: #{tpu_custom_call.1} parent=1 // pred_fallthru
      _
    // Predicated region
    $region18: #{tpu_custom_call.1} parent=1 // pred_check
      _
    $region19: #{tpu_custom_call.1} parent=1 // pred_check_branch
      %127 = sbr.rel (0) target = $region21
    $region20: #{tpu_custom_call.1} parent=1 // pred_region
      %128 = dma.done [#allocation4], 512
    $region21: #{tpu_custom_call.1} parent=1 // pred_fallthru
      _
    %129 = vsyncpa [#allocation3], 1
    %130 = vsyncpa [#allocation4], 1

// kernel: tpu_custom_call.1
$region0: #{tpu_custom_call.1}
  #allocation0 [shape = 'u32[]', space=smem, size = 0x4, offset = 0x4, fixed_abs, tag = 'smem constant byte address 0x4 - core index']
  #allocation1 [shape = 'u32[144,128]{1,0:T(1,128)}', space=vmem, size = 0x12000, scoped, tag = 'internal scratch']
  %s0 = inlined_call_operand.hbm [shape: bf16[16,16], index: 0, kind: input, shape index: {}]
  %s1 = inlined_call_operand.hbm [shape: f32[2,4,4,64], index: 1, kind: input, shape index: {}]
  %s2 = inlined_call_operand.hbm [shape: f32[2,4,4,4,4,4], index: 2, kind: output, shape index: {}]
  %s3 = sld [smem:[#allocation0]]
  $region56: #{tpu_custom_call.1} parent=0
    _
  %s5 = ssub.s32 1, %s3
  %s6 = scalar_select 0, %s5, %s3
  $region1: #{tpu_custom_call.1} parent=0
    #allocation2 [shape = 'u8[4096]{0}', space=vmem, size = 0x1000, scoped, tag = 'input window, operand 0, single buffered']
    #allocation3 [shape = 's32[2]{0}', space=sflag, size = 0x8, scoped, tag = 'scoped memory for tpu_custom_call.1']
    #allocation4 [shape = 's32[2]{0}', space=sflag, size = 0x8, scoped, tag = 'scoped memory for tpu_custom_call.1']
    #allocation5 [shape = 'u8[16384]{0}', space=vmem, size = 0x4000, scoped, tag = 'input window, operand 1']
    #allocation6 [shape = 's32[2]{0}', space=sflag, size = 0x8, scoped, tag = 'scoped memory for tpu_custom_call.1']
    #allocation7 [shape = 'u8[262144]{0}', space=vmem, size = 0x40000, scoped, tag = 'output window, operand 0']
    %7 = vsyncpa [#allocation3], 0
    %8 = vsyncpa [#allocation6], 0
    %s9 = scalar_lea.sflag [#allocation6], 1
    %10 = vsyncpa %s9, 0
    %11 = vsyncpa [#allocation4], 0
    %s12 = scalar_lea.sflag [#allocation4], 1
    %13 = vsyncpa %s12, 0
    loop: start=0, step=1, limit=4
    $region2: #{tpu_custom_call.1} parent=1 // loop_pre_header
      _
    $region3: #{tpu_custom_call.1} parent=1 // loop_header
      %s15 = sphi 0, %s19
      %p16 = scmp.ge.s32.totalorder %s15, 4
      %s22 = sphi 0, %s41
      %s23 = sphi 0, %s37
      %s24 = sphi 0, %s33
      %s25 = sphi 0, %s22
      %s26 = sphi 0, %s23
      %s27 = sphi 0, %s24
      %s28 = sphi 0, %s25
      %s29 = sphi 0, %s26
      %s30 = sphi 0, %s27
      %s42 = sphi 0, %s42
      %s44 = sphi 0, %s42
      %s45 = sphi 0, %s44
      %s59 = sphi 0, %s45
      %s69 = sphi 0, %s71
      %s72 = sphi 0, %s69
      %s73 = sphi 0, %s72
      %s89 = sphi 0, %s73
      %s99 = sphi 0, %s101
      %s102 = sphi 0, %s99
      %s103 = sphi 0, %s102
      %s119 = sphi 0, %s103
    $region4: #{tpu_custom_call.1} parent=1 // loop_header_branch
      %18 = sbr.rel (%p16) target = $region8
    $region5: #{tpu_custom_call.1} parent=1 // loop_body
      %s20 = ssub.s32 %s15, 1
      %s21 = ssub.s32 %s15, 2
      %s31 = sadd.s32 1, %s24
      %p32 = scmp.ge.s32.totalorder %s31, 1
      %s33 = scalar_select %p32, 0, %s31
      %s34 = sadd.s32 1, %s23
      %s35 = scalar_select %p32, %s34, %s23
      %p36 = scmp.ge.s32.totalorder %s35, 1
      %s37 = scalar_select %p36, 0, %s35
      %s38 = sadd.s32 1, %s22
      %s39 = scalar_select %p36, %s38, %s22
      %p40 = scmp.ge.s32.totalorder %s39, 2
      %s41 = scalar_select %p40, 0, %s39
      %s43 = sadd.s32 %s42, 1
      %p46 = scmp.eq.s32.totalorder %s15, 1
      %p47 = scmp.ne.s32.totalorder %s42, %s44
      %p48 = scmp.eq.s32.totalorder %s15, 0
      %p49 = por %p47, %p48
      %p50 = scmp.ne.s32.totalorder %s42, %s44
      %p51 = scmp.eq.s32.totalorder %s20, 1
      %p52 = por %p50, %p51
      %p53 = scmp.ne.s32.totalorder %s44, %s45
      %p54 = scmp.eq.s32.totalorder %s20, 0
      %p55 = por %p53, %p54
      %p56 = scmp.ne.s32.totalorder %s44, %s45
      %p57 = scmp.eq.s32.totalorder %s21, 1
      %p58 = por %p56, %p57
      %p60 = scmp.ne.s32.totalorder %s45, %s59
      %p61 = scmp.eq.s32.totalorder %s21, 0
      %p62 = por %p60, %p61
      %s63 = ssub.s32 %s22, %s41
      %s64 = ssub.s32 %s23, %s37
      %s65 = sor.u32 %s63, %s64
      %s66 = ssub.s32 %s24, %s33
      %s67 = sor.u32 %s65, %s66
      %p68 = scmp.eq.s32.totalorder %s67, 0
      %s70 = sadd.s32 %s69, 1
      %s71 = scalar_select %p68, %s69, %s70
      %p74 = pneg %p68
      %p75 = scmp.eq.s32.totalorder %s15, 1
      %p76 = por %p74, %p75
      %p77 = scmp.ne.s32.totalorder %s69, %s72
      %p78 = scmp.eq.s32.totalorder %s15, 0
      %p79 = por %p77, %p78
      %p80 = scmp.ne.s32.totalorder %s69, %s72
      %p81 = scmp.eq.s32.totalorder %s20, 1
      %p82 = por %p80, %p81
      %p83 = scmp.ne.s32.totalorder %s72, %s73
      %p84 = scmp.eq.s32.totalorder %s20, 0
      %p85 = por %p83, %p84
      %p86 = scmp.ne.s32.totalorder %s72, %s73
      %p87 = scmp.eq.s32.totalorder %s21, 1
      %p88 = por %p86, %p87
      %p90 = scmp.ne.s32.totalorder %s73, %s89
      %p91 = scmp.eq.s32.totalorder %s21, 0
      %p92 = por %p90, %p91
      %s93 = ssub.s32 %s22, %s41
      %s94 = ssub.s32 %s23, %s37
      %s95 = sor.u32 %s93, %s94
      %s96 = ssub.s32 %s24, %s33
      %s97 = sor.u32 %s95, %s96
      %p98 = scmp.eq.s32.totalorder %s97, 0
      %s100 = sadd.s32 %s99, 1
      %s101 = scalar_select %p98, %s99, %s100
      %p104 = pneg %p98
      %p105 = scmp.eq.s32.totalorder %s15, 1
      %p106 = por %p104, %p105
      %p107 = scmp.ne.s32.totalorder %s99, %s102
      %p108 = scmp.eq.s32.totalorder %s15, 0
      %p109 = por %p107, %p108
      %p110 = scmp.ne.s32.totalorder %s99, %s102
      %p111 = scmp.eq.s32.totalorder %s20, 1
      %p112 = por %p110, %p111
      %p113 = scmp.ne.s32.totalorder %s102, %s103
      %p114 = scmp.eq.s32.totalorder %s20, 0
      %p115 = por %p113, %p114
      %p116 = scmp.ne.s32.totalorder %s102, %s103
      %p117 = scmp.eq.s32.totalorder %s21, 1
      %p118 = por %p116, %p117
      %p120 = scmp.ne.s32.totalorder %s103, %s119
      %p121 = scmp.eq.s32.totalorder %s21, 0
      %p122 = por %p120, %p121
      %p123 = scmp.le.s32.totalorder 1, %s15
      %p124 = scmp.lt.s32.totalorder %s15, 3
      %p125 = pnand %p123, %p124
      %p126 = pneg %p125
      // Predicated region
      $region9: #{tpu_custom_call.1} parent=5 // pred_check
        _
      $region10: #{tpu_custom_call.1} parent=5 // pred_check_branch
        %128 = sbr.rel (%p125) target = $region12
      $region11: #{tpu_custom_call.1} parent=5 // pred_region
        %s129 = ssub.s32 %s15, 1
        // Predicated region
        $region13: #{tpu_custom_call.1} parent=11 // pred_check
          %p130 = pneg %p55
        $region14: #{tpu_custom_call.1} parent=11 // pred_check_branch
          %132 = sbr.rel (%p130) target = $region16
        $region15: #{tpu_custom_call.1} parent=11 // pred_region
          %s134 = ssub.s32 128, 128
          %135 = vsyncadd [#allocation3], %s134
          %s136 = sshll.u32 [#allocation2], 4
          %s137 = int_to_ptr.vmem [resolvable:$true] %s136
          %142 = dma.hbm_to_vmem [thread:$0]  %s0, 128, %s137, [#allocation3], 64, 64, 4
        $region16: #{tpu_custom_call.1} parent=11 // pred_fallthru
          _
      $region12: #{tpu_custom_call.1} parent=5 // pred_fallthru
        _
      %p143 = scmp.lt.s32.totalorder %s15, 2
      // Predicated region
      $region17: #{tpu_custom_call.1} parent=5 // pred_check
        %p144 = pneg %p143
      $region18: #{tpu_custom_call.1} parent=5 // pred_check_branch
        %146 = sbr.rel (%p144) target = $region20
      $region19: #{tpu_custom_call.1} parent=5 // pred_region
        // Predicated region
        $region21: #{tpu_custom_call.1} parent=19 // pred_check
          %p147 = pneg %p79
        $region22: #{tpu_custom_call.1} parent=19 // pred_check_branch
          %149 = sbr.rel (%p147) target = $region24
        $region23: #{tpu_custom_call.1} parent=19 // pred_region
          %s150 = sand.u32 %s69, 1
          %s151 = scalar_lea.sflag [#allocation6], %s150
          %s152 = sand.u32 %s69, 1
          %s153 = smul.addr %s152, 16
          %s154 = scalar_lea.vmem [#allocation5], %s153
          %s155 = smul.u32 4, %s23
          %s157 = ssub.s32 256, 256
          %158 = vsyncadd %s151, %s157
          %s159 = sadd.s32 %s24, %s155
          %s160 = smul.addr %s22, 4
          %s161 = sadd.s32 %s159, %s160
          %s162 = smul.addr %s161, 64
          %s163 = scalar_lea.hbm %s1, %s162
          %s164 = sshll.u32 %s154, 4
          %s165 = int_to_ptr.vmem [resolvable:$true] %s164
          %170 = dma.hbm_to_vmem [thread:$0]  %s163, 256, %s165, %s151, 64, 64, 4
        $region24: #{tpu_custom_call.1} parent=19 // pred_fallthru
          _
      $region20: #{tpu_custom_call.1} parent=5 // pred_fallthru
        _
      %p171 = scmp.le.s32.totalorder 1, %s15
      %p172 = scmp.lt.s32.totalorder %s15, 3
      %p173 = pnand %p171, %p172
      %p174 = pneg %p173
      // Predicated region
      $region25: #{tpu_custom_call.1} parent=5 // pred_check
        _
      $region26: #{tpu_custom_call.1} parent=5 // pred_check_branch
        %176 = sbr.rel (%p173) target = $region28
      $region27: #{tpu_custom_call.1} parent=5 // pred_region
        %s177 = ssub.s32 %s15, 1
        // Predicated region
        $region29: #{tpu_custom_call.1} parent=27 // pred_check
          %p178 = pneg %p55
        $region30: #{tpu_custom_call.1} parent=27 // pred_check_branch
          %180 = sbr.rel (%p178) target = $region32
        $region31: #{tpu_custom_call.1} parent=27 // pred_region
          %181 = dma.done [#allocation3], 128
        $region32: #{tpu_custom_call.1} parent=27 // pred_fallthru
          _
        %s182 = sand.u32 %s72, 1
        %s183 = scalar_lea.sflag [#allocation6], %s182
        %s184 = sand.u32 %s72, 1
        %s185 = smul.addr %s184, 16
        %s186 = scalar_lea.vmem [#allocation5], %s185
        // Predicated region
        $region33: #{tpu_custom_call.1} parent=27 // pred_check
          %p187 = pneg %p85
        $region34: #{tpu_custom_call.1} parent=27 // pred_check_branch
          %189 = sbr.rel (%p187) target = $region36
        $region35: #{tpu_custom_call.1} parent=27 // pred_region
          %190 = dma.done %s183, 256
        $region36: #{tpu_custom_call.1} parent=27 // pred_fallthru
          _
        %p191 = pneg %p55
        %p192 = pneg %p52
        %s193 = sand.u32 %s72, 1
        %s194 = scalar_lea.sflag [#allocation6], %s193
        %s195 = sand.u32 %s72, 1
        %s196 = smul.addr %s195, 16
        %s197 = scalar_lea.vmem [#allocation5], %s196
        %p198 = pneg %p85
        %p199 = pneg %p82
        %p200 = pneg %p115
        %p201 = pneg %p112
        %s202 = sand.u32 %s102, 1
        %s203 = scalar_lea.sflag [#allocation4], %s202
        %s204 = sand.u32 %s102, 1
        %s205 = smul.addr %s204, 256
        %s206 = scalar_lea.vmem [#allocation7], %s205
        %s207 = smul.u32 4, %s26
        %s208 = smul.u32 4, %s26
        %v210 = vld [vmem:[#allocation2] sm:$0xf]
        %v211 = vld [vmem:[#allocation2 + $0x4] sm:$0xf]
        loop: start=0, step=1, limit=4
        $region37: #{tpu_custom_call.1} parent=27 // loop_pre_header
          _
        $region38: #{tpu_custom_call.1} parent=27 // loop_header
          %s213 = sphi 0, %s217
          %p214 = scmp.ge.s32.totalorder %s213, 4
        $region39: #{tpu_custom_call.1} parent=27 // loop_header_branch
          %216 = sbr.rel (%p214) target = $region43
        $region40: #{tpu_custom_call.1} parent=27 // loop_body
          %s218 = smul.u32 %s213, 4
          %s219 = scalar_lea.vmem %s186, %s218 [#allocation5]
          %v220 = vld [vmem:[%s219] sm:$0xf]
          %v221 = vpack.c.bf16 %v220, %v220
          %v222 = vunpack.c.l.bf16 %v221
          %v223 = vsub.f32 %v220, %v222
          %v224 = vpack.c.bf16 %v223, %v223
          %v225 = vunpack.c.l.bf16 %v224
          %v226 = vsub.f32 %v223, %v225
          %v227 = vpack.c.bf16 %v226, %v226
          %v230 = vunpack.c.l.b16 %v210
          %v231 = vunpack.c.l.b16 %v211
          %v232 = vpack.c.b16 %v231, %v230
          %vm234 = vcmask 130048
          %v236 = vsel %vm234, %v224, 0
          %238 = vmatprep.subr.bf16.mxu0 0
          %239 = vmatpush1.bf16.msra.mxu0 %v232
          %240 = vmatprep.subr.bf16.mxu0 0
          %241 = vmatpush1.bf16.msra.mxu0 0
          %242 = vmatprep.subr.bf16.mxu0 0
          %243 = vmatpush1.bf16.msra.mxu0 0
          %244 = vmatprep.subr.bf16.mxu0 0
          %245 = vmatpush1.bf16.msra.mxu0 0
          %246 = vmatprep.subr.bf16.mxu0 0
          %247 = vmatpush1.bf16.msra.mxu0 0
          %248 = vmatprep.subr.bf16.mxu0 0
          %249 = vmatpush1.bf16.msra.mxu0 0
          %250 = vmatprep.subr.bf16.mxu0 0
          %251 = vmatpush1.bf16.msra.mxu0 0
          %252 = vmatprep.subr.bf16.mxu0 0
          %253 = vmatpush1.bf16.msra.mxu0 0
          %254 = vmatprep.subr.bf16.mxu0 0
          %255 = vmatpush1.bf16.msra.mxu0 0
          %256 = vmatprep.subr.bf16.mxu0 0
          %257 = vmatpush1.bf16.msra.mxu0 0
          %258 = vmatprep.subr.bf16.mxu0 0
          %259 = vmatpush1.bf16.msra.mxu0 0
          %260 = vmatprep.subr.bf16.mxu0 0
          %261 = vmatpush1.bf16.msra.mxu0 0
          %262 = vmatprep.subr.bf16.mxu0 0
          %263 = vmatpush1.bf16.msra.mxu0 0
          %264 = vmatprep.subr.bf16.mxu0 0
          %265 = vmatpush1.bf16.msra.mxu0 0
          %266 = vmatprep.subr.bf16.mxu0 0
          %267 = vmatpush1.bf16.msra.mxu0 0
          %268 = vmatprep.subr.bf16.mxu0 0
          %269 = vmatpush1.bf16.msra.mxu0 0
          %270 = vmatprep.mubr.bf16.mxu0 0
          %271 = vmatmul.mubr.bf16.gmra.mrb[0].mxu0 %v236
          %v272 = vpop.f32.mrb[0].mxu0
          %v273 = vadd.f32 0.0, %v272
          %v274 = vpop.f32.mrb[0].mxu0
          %v275 = vpop.f32.mrb[0].mxu0
          %v276 = vpop.f32.mrb[0].mxu0
          %277 = vdwg.mxu0
          %v279 = vsel %vm234, %v221, 0
          %281 = vmatprep.subr.bf16.mxu0 0
          %282 = vmatpush1.bf16.msra.mxu0 %v232
          %283 = vmatprep.subr.bf16.mxu0 0
          %284 = vmatpush1.bf16.msra.mxu0 0
          %285 = vmatprep.subr.bf16.mxu0 0
          %286 = vmatpush1.bf16.msra.mxu0 0
          %287 = vmatprep.subr.bf16.mxu0 0
          %288 = vmatpush1.bf16.msra.mxu0 0
          %289 = vmatprep.subr.bf16.mxu0 0
          %290 = vmatpush1.bf16.msra.mxu0 0
          %291 = vmatprep.subr.bf16.mxu0 0
          %292 = vmatpush1.bf16.msra.mxu0 0
          %293 = vmatprep.subr.bf16.mxu0 0
          %294 = vmatpush1.bf16.msra.mxu0 0
          %295 = vmatprep.subr.bf16.mxu0 0
          %296 = vmatpush1.bf16.msra.mxu0 0
          %297 = vmatprep.subr.bf16.mxu0 0
          %298 = vmatpush1.bf16.msra.mxu0 0
          %299 = vmatprep.subr.bf16.mxu0 0
          %300 = vmatpush1.bf16.msra.mxu0 0
          %301 = vmatprep.subr.bf16.mxu0 0
          %302 = vmatpush1.bf16.msra.mxu0 0
          %303 = vmatprep.subr.bf16.mxu0 0
          %304 = vmatpush1.bf16.msra.mxu0 0
          %305 = vmatprep.subr.bf16.mxu0 0
          %306 = vmatpush1.bf16.msra.mxu0 0
          %307 = vmatprep.subr.bf16.mxu0 0
          %308 = vmatpush1.bf16.msra.mxu0 0
          %309 = vmatprep.subr.bf16.mxu0 0
          %310 = vmatpush1.bf16.msra.mxu0 0
          %311 = vmatprep.subr.bf16.mxu0 0
          %312 = vmatpush1.bf16.msra.mxu0 0
          %313 = vmatprep.mubr.bf16.mxu0 0
          %314 = vmatmul.mubr.bf16.gmra.mrb[0].mxu0 %v279
          %v315 = vpop.f32.mrb[0].mxu0
          %v316 = vadd.f32 %v273, %v315
          %v317 = vpop.f32.mrb[0].mxu0
          %v318 = vpop.f32.mrb[0].mxu0
          %v319 = vpop.f32.mrb[0].mxu0
          %320 = vdwg.mxu0
          %v322 = vsel %vm234, %v227, 0
          %324 = vmatprep.subr.bf16.mxu0 0
          %325 = vmatpush1.bf16.msra.mxu0 %v232
          %326 = vmatprep.subr.bf16.mxu0 0
          %327 = vmatpush1.bf16.msra.mxu0 0
          %328 = vmatprep.subr.bf16.mxu0 0
          %329 = vmatpush1.bf16.msra.mxu0 0
          %330 = vmatprep.subr.bf16.mxu0 0
          %331 = vmatpush1.bf16.msra.mxu0 0
          %332 = vmatprep.subr.bf16.mxu0 0
          %333 = vmatpush1.bf16.msra.mxu0 0
          %334 = vmatprep.subr.bf16.mxu0 0
          %335 = vmatpush1.bf16.msra.mxu0 0
          %336 = vmatprep.subr.bf16.mxu0 0
          %337 = vmatpush1.bf16.msra.mxu0 0
          %338 = vmatprep.subr.bf16.mxu0 0
          %339 = vmatpush1.bf16.msra.mxu0 0
          %340 = vmatprep.subr.bf16.mxu0 0
          %341 = vmatpush1.bf16.msra.mxu0 0
          %342 = vmatprep.subr.bf16.mxu0 0
          %343 = vmatpush1.bf16.msra.mxu0 0
          %344 = vmatprep.subr.bf16.mxu0 0
          %345 = vmatpush1.bf16.msra.mxu0 0
          %346 = vmatprep.subr.bf16.mxu0 0
          %347 = vmatpush1.bf16.msra.mxu0 0
          %348 = vmatprep.subr.bf16.mxu0 0
          %349 = vmatpush1.bf16.msra.mxu0 0
          %350 = vmatprep.subr.bf16.mxu0 0
          %351 = vmatpush1.bf16.msra.mxu0 0
          %352 = vmatprep.subr.bf16.mxu0 0
          %353 = vmatpush1.bf16.msra.mxu0 0
          %354 = vmatprep.subr.bf16.mxu0 0
          %355 = vmatpush1.bf16.msra.mxu0 0
          %356 = vmatprep.mubr.bf16.mxu0 0
          %357 = vmatmul.mubr.bf16.gmra.mrb[0].mxu0 %v322
          %v358 = vpop.f32.mrb[0].mxu0
          %v359 = vadd.f32 0.0, %v358
          %v360 = vpop.f32.mrb[0].mxu0
          %v361 = vpop.f32.mrb[0].mxu0
          %v362 = vpop.f32.mrb[0].mxu0
          %363 = vdwg.mxu0
          %v364 = vadd.f32 %v316, %v359
          %s365 = scalar_lea.vmem %s206, %s218 [#allocation7]
          %vm366 = vcmask 27648
          %367 = vst.msk [vmem:[%s365] sm:$0xf] %vm366, %v364
          %369 = vrot.lane.b32.xlu0 %v364, 124
          %v370 = vpop.permute.xlu0 %369
          %s372 = sadd.s32 %s218, 16
          %s373 = scalar_lea.vmem %s206, %s372 [#allocation7]
          %374 = vst.msk [vmem:[%s373] sm:$0xf] %vm366, %v370
          %375 = vrot.lane.b32.xlu0 %v364, 120
          %v376 = vpop.permute.xlu0 %375
          %s378 = sadd.s32 %s218, 32
          %s379 = scalar_lea.vmem %s206, %s378 [#allocation7]
          %380 = vst.msk [vmem:[%s379] sm:$0xf] %vm366, %v376
          %381 = vrot.lane.b32.xlu0 %v364, 116
          %v382 = vpop.permute.xlu0 %381
          %s384 = sadd.s32 %s218, 48
          %s385 = scalar_lea.vmem %s206, %s384 [#allocation7]
          %386 = vst.msk [vmem:[%s385] sm:$0xf] %vm366, %v382
          %388 = vrot.lane.b32.xlu0 %v224, 112
          %v389 = vpop.permute.xlu0 %388
          %v391 = vsel %vm234, %v389, 0
          %393 = vmatprep.subr.bf16.mxu0 0
          %394 = vmatpush1.bf16.msra.mxu0 %v232
          %395 = vmatprep.subr.bf16.mxu0 0
          %396 = vmatpush1.bf16.msra.mxu0 0
          %397 = vmatprep.subr.bf16.mxu0 0
          %398 = vmatpush1.bf16.msra.mxu0 0
          %399 = vmatprep.subr.bf16.mxu0 0
          %400 = vmatpush1.bf16.msra.mxu0 0
          %401 = vmatprep.subr.bf16.mxu0 0
          %402 = vmatpush1.bf16.msra.mxu0 0
          %403 = vmatprep.subr.bf16.mxu0 0
          %404 = vmatpush1.bf16.msra.mxu0 0
          %405 = vmatprep.subr.bf16.mxu0 0
          %406 = vmatpush1.bf16.msra.mxu0 0
          %407 = vmatprep.subr.bf16.mxu0 0
          %408 = vmatpush1.bf16.msra.mxu0 0
          %409 = vmatprep.subr.bf16.mxu0 0
          %410 = vmatpush1.bf16.msra.mxu0 0
          %411 = vmatprep.subr.bf16.mxu0 0
          %412 = vmatpush1.bf16.msra.mxu0 0
          %413 = vmatprep.subr.bf16.mxu0 0
          %414 = vmatpush1.bf16.msra.mxu0 0
          %415 = vmatprep.subr.bf16.mxu0 0
          %416 = vmatpush1.bf16.msra.mxu0 0
          %417 = vmatprep.subr.bf16.mxu0 0
          %418 = vmatpush1.bf16.msra.mxu0 0
          %419 = vmatprep.subr.bf16.mxu0 0
          %420 = vmatpush1.bf16.msra.mxu0 0
          %421 = vmatprep.subr.bf16.mxu0 0
          %422 = vmatpush1.bf16.msra.mxu0 0
          %423 = vmatprep.subr.bf16.mxu0 0
          %424 = vmatpush1.bf16.msra.mxu0 0
          %425 = vmatprep.mubr.bf16.mxu0 0
          %426 = vmatmul.mubr.bf16.gmra.mrb[0].mxu0 %v391
          %v427 = vpop.f32.mrb[0].mxu0
          %v428 = vadd.f32 0.0, %v427
          %v429 = vpop.f32.mrb[0].mxu0
          %v430 = vpop.f32.mrb[0].mxu0
          %v431 = vpop.f32.mrb[0].mxu0
          %432 = vdwg.mxu0
          %434 = vrot.lane.b32.xlu0 %v221, 112
          %v435 = vpop.permute.xlu0 %434
          %v437 = vsel %vm234, %v435, 0
          %439 = vmatprep.subr.bf16.mxu0 0
          %440 = vmatpush1.bf16.msra.mxu0 %v232
          %441 = vmatprep.subr.bf16.mxu0 0
          %442 = vmatpush1.bf16.msra.mxu0 0
          %443 = vmatprep.subr.bf16.mxu0 0
          %444 = vmatpush1.bf16.msra.mxu0 0
          %445 = vmatprep.subr.bf16.mxu0 0
          %446 = vmatpush1.bf16.msra.mxu0 0
          %447 = vmatprep.subr.bf16.mxu0 0
          %448 = vmatpush1.bf16.msra.mxu0 0
          %449 = vmatprep.subr.bf16.mxu0 0
          %450 = vmatpush1.bf16.msra.mxu0 0
          %451 = vmatprep.subr.bf16.mxu0 0
          %452 = vmatpush1.bf16.msra.mxu0 0
          %453 = vmatprep.subr.bf16.mxu0 0
          %454 = vmatpush1.bf16.msra.mxu0 0
          %455 = vmatprep.subr.bf16.mxu0 0
          %456 = vmatpush1.bf16.msra.mxu0 0
          %457 = vmatprep.subr.bf16.mxu0 0
          %458 = vmatpush1.bf16.msra.mxu0 0
          %459 = vmatprep.subr.bf16.mxu0 0
          %460 = vmatpush1.bf16.msra.mxu0 0
          %461 = vmatprep.subr.bf16.mxu0 0
          %462 = vmatpush1.bf16.msra.mxu0 0
          %463 = vmatprep.subr.bf16.mxu0 0
          %464 = vmatpush1.bf16.msra.mxu0 0
          %465 = vmatprep.subr.bf16.mxu0 0
          %466 = vmatpush1.bf16.msra.mxu0 0
          %467 = vmatprep.subr.bf16.mxu0 0
          %468 = vmatpush1.bf16.msra.mxu0 0
          %469 = vmatprep.subr.bf16.mxu0 0
          %470 = vmatpush1.bf16.msra.mxu0 0
          %471 = vmatprep.mubr.bf16.mxu0 0
          %472 = vmatmul.mubr.bf16.gmra.mrb[0].mxu0 %v437
          %v473 = vpop.f32.mrb[0].mxu0
          %v474 = vadd.f32 %v428, %v473
          %v475 = vpop.f32.mrb[0].mxu0
          %v476 = vpop.f32.mrb[0].mxu0
          %v477 = vpop.f32.mrb[0].mxu0
          %478 = vdwg.mxu0
          %480 = vrot.lane.b32.xlu0 %v227, 112
          %v481 = vpop.permute.xlu0 %480
          %v483 = vsel %vm234, %v481, 0
          %485 = vmatprep.subr.bf16.mxu0 0
          %486 = vmatpush1.bf16.msra.mxu0 %v232
          %487 = vmatprep.subr.bf16.mxu0 0
          %488 = vmatpush1.bf16.msra.mxu0 0
          %489 = vmatprep.subr.bf16.mxu0 0
          %490 = vmatpush1.bf16.msra.mxu0 0
          %491 = vmatprep.subr.bf16.mxu0 0
          %492 = vmatpush1.bf16.msra.mxu0 0
          %493 = vmatprep.subr.bf16.mxu0 0
          %494 = vmatpush1.bf16.msra.mxu0 0
          %495 = vmatprep.subr.bf16.mxu0 0
          %496 = vmatpush1.bf16.msra.mxu0 0
          %497 = vmatprep.subr.bf16.mxu0 0
          %498 = vmatpush1.bf16.msra.mxu0 0
          %499 = vmatprep.subr.bf16.mxu0 0
          %500 = vmatpush1.bf16.msra.mxu0 0
          %501 = vmatprep.subr.bf16.mxu0 0
          %502 = vmatpush1.bf16.msra.mxu0 0
          %503 = vmatprep.subr.bf16.mxu0 0
          %504 = vmatpush1.bf16.msra.mxu0 0
          %505 = vmatprep.subr.bf16.mxu0 0
          %506 = vmatpush1.bf16.msra.mxu0 0
          %507 = vmatprep.subr.bf16.mxu0 0
          %508 = vmatpush1.bf16.msra.mxu0 0
          %509 = vmatprep.subr.bf16.mxu0 0
          %510 = vmatpush1.bf16.msra.mxu0 0
          %511 = vmatprep.subr.bf16.mxu0 0
          %512 = vmatpush1.bf16.msra.mxu0 0
          %513 = vmatprep.subr.bf16.mxu0 0
          %514 = vmatpush1.bf16.msra.mxu0 0
          %515 = vmatprep.subr.bf16.mxu0 0
          %516 = vmatpush1.bf16.msra.mxu0 0
          %517 = vmatprep.mubr.bf16.mxu0 0
          %518 = vmatmul.mubr.bf16.gmra.mrb[0].mxu0 %v483
          %v519 = vpop.f32.mrb[0].mxu0
          %v520 = vadd.f32 0.0, %v519
          %v521 = vpop.f32.mrb[0].mxu0
          %v522 = vpop.f32.mrb[0].mxu0
          %v523 = vpop.f32.mrb[0].mxu0
          %524 = vdwg.mxu0
          %v525 = vadd.f32 %v474, %v520
          %s526 = sadd.s32 %s218, 64
          %s527 = scalar_lea.vmem %s206, %s526 [#allocation7]
          %528 = vst.msk [vmem:[%s527] sm:$0xf] %vm366, %v525
          %530 = vrot.lane.b32.xlu0 %v525, 124
          %v531 = vpop.permute.xlu0 %530
          %s533 = sadd.s32 %s372, 64
          %s534 = scalar_lea.vmem %s206, %s533 [#allocation7]
          %535 = vst.msk [vmem:[%s534] sm:$0xf] %vm366, %v531
          %536 = vrot.lane.b32.xlu0 %v525, 120
          %v537 = vpop.permute.xlu0 %536
          %s539 = sadd.s32 %s378, 64
          %s540 = scalar_lea.vmem %s206, %s539 [#allocation7]
          %541 = vst.msk [vmem:[%s540] sm:$0xf] %vm366, %v537
          %542 = vrot.lane.b32.xlu0 %v525, 116
          %v543 = vpop.permute.xlu0 %542
          %s545 = sadd.s32 %s384, 64
          %s546 = scalar_lea.vmem %s206, %s545 [#allocation7]
          %547 = vst.msk [vmem:[%s546] sm:$0xf] %vm366, %v543
          %548 = vrot.lane.b32.xlu0 %v224, 96
          %v549 = vpop.permute.xlu0 %548
          %v551 = vsel %vm234, %v549, 0
          %553 = vmatprep.subr.bf16.mxu0 0
          %554 = vmatpush1.bf16.msra.mxu0 %v232
          %555 = vmatprep.subr.bf16.mxu0 0
          %556 = vmatpush1.bf16.msra.mxu0 0
          %557 = vmatprep.subr.bf16.mxu0 0
          %558 = vmatpush1.bf16.msra.mxu0 0
          %559 = vmatprep.subr.bf16.mxu0 0
          %560 = vmatpush1.bf16.msra.mxu0 0
          %561 = vmatprep.subr.bf16.mxu0 0
          %562 = vmatpush1.bf16.msra.mxu0 0
          %563 = vmatprep.subr.bf16.mxu0 0
          %564 = vmatpush1.bf16.msra.mxu0 0
          %565 = vmatprep.subr.bf16.mxu0 0
          %566 = vmatpush1.bf16.msra.mxu0 0
          %567 = vmatprep.subr.bf16.mxu0 0
          %568 = vmatpush1.bf16.msra.mxu0 0
          %569 = vmatprep.subr.bf16.mxu0 0
          %570 = vmatpush1.bf16.msra.mxu0 0
          %571 = vmatprep.subr.bf16.mxu0 0
          %572 = vmatpush1.bf16.msra.mxu0 0
          %573 = vmatprep.subr.bf16.mxu0 0
          %574 = vmatpush1.bf16.msra.mxu0 0
          %575 = vmatprep.subr.bf16.mxu0 0
          %576 = vmatpush1.bf16.msra.mxu0 0
          %577 = vmatprep.subr.bf16.mxu0 0
          %578 = vmatpush1.bf16.msra.mxu0 0
          %579 = vmatprep.subr.bf16.mxu0 0
          %580 = vmatpush1.bf16.msra.mxu0 0
          %581 = vmatprep.subr.bf16.mxu0 0
          %582 = vmatpush1.bf16.msra.mxu0 0
          %583 = vmatprep.subr.bf16.mxu0 0
          %584 = vmatpush1.bf16.msra.mxu0 0
          %585 = vmatprep.mubr.bf16.mxu0 0
          %586 = vmatmul.mubr.bf16.gmra.mrb[0].mxu0 %v551
          %v587 = vpop.f32.mrb[0].mxu0
          %v588 = vadd.f32 0.0, %v587
          %v589 = vpop.f32.mrb[0].mxu0
          %v590 = vpop.f32.mrb[0].mxu0
          %v591 = vpop.f32.mrb[0].mxu0
          %592 = vdwg.mxu0
          %593 = vrot.lane.b32.xlu0 %v221, 96
          %v594 = vpop.permute.xlu0 %593
          %v596 = vsel %vm234, %v594, 0
          %598 = vmatprep.subr.bf16.mxu0 0
          %599 = vmatpush1.bf16.msra.mxu0 %v232
          %600 = vmatprep.subr.bf16.mxu0 0
          %601 = vmatpush1.bf16.msra.mxu0 0
          %602 = vmatprep.subr.bf16.mxu0 0
          %603 = vmatpush1.bf16.msra.mxu0 0
          %604 = vmatprep.subr.bf16.mxu0 0
          %605 = vmatpush1.bf16.msra.mxu0 0
          %606 = vmatprep.subr.bf16.mxu0 0
          %607 = vmatpush1.bf16.msra.mxu0 0
          %608 = vmatprep.subr.bf16.mxu0 0
          %609 = vmatpush1.bf16.msra.mxu0 0
          %610 = vmatprep.subr.bf16.mxu0 0
          %611 = vmatpush1.bf16.msra.mxu0 0
          %612 = vmatprep.subr.bf16.mxu0 0
          %613 = vmatpush1.bf16.msra.mxu0 0
          %614 = vmatprep.subr.bf16.mxu0 0
          %615 = vmatpush1.bf16.msra.mxu0 0
          %616 = vmatprep.subr.bf16.mxu0 0
          %617 = vmatpush1.bf16.msra.mxu0 0
          %618 = vmatprep.subr.bf16.mxu0 0
          %619 = vmatpush1.bf16.msra.mxu0 0
          %620 = vmatprep.subr.bf16.mxu0 0
          %621 = vmatpush1.bf16.msra.mxu0 0
          %622 = vmatprep.subr.bf16.mxu0 0
          %623 = vmatpush1.bf16.msra.mxu0 0
          %624 = vmatprep.subr.bf16.mxu0 0
          %625 = vmatpush1.bf16.msra.mxu0 0
          %626 = vmatprep.subr.bf16.mxu0 0
          %627 = vmatpush1.bf16.msra.mxu0 0
          %628 = vmatprep.subr.bf16.mxu0 0
          %629 = vmatpush1.bf16.msra.mxu0 0
          %630 = vmatprep.mubr.bf16.mxu0 0
          %631 = vmatmul.mubr.bf16.gmra.mrb[0].mxu0 %v596
          %v632 = vpop.f32.mrb[0].mxu0
          %v633 = vadd.f32 %v588, %v632
          %v634 = vpop.f32.mrb[0].mxu0
          %v635 = vpop.f32.mrb[0].mxu0
          %v636 = vpop.f32.mrb[0].mxu0
          %637 = vdwg.mxu0
          %638 = vrot.lane.b32.xlu0 %v227, 96
          %v639 = vpop.permute.xlu0 %638
          %v641 = vsel %vm234, %v639, 0
          %643 = vmatprep.subr.bf16.mxu0 0
          %644 = vmatpush1.bf16.msra.mxu0 %v232
          %645 = vmatprep.subr.bf16.mxu0 0
          %646 = vmatpush1.bf16.msra.mxu0 0
          %647 = vmatprep.subr.bf16.mxu0 0
          %648 = vmatpush1.bf16.msra.mxu0 0
          %649 = vmatprep.subr.bf16.mxu0 0
          %650 = vmatpush1.bf16.msra.mxu0 0
          %651 = vmatprep.subr.bf16.mxu0 0
          %652 = vmatpush1.bf16.msra.mxu0 0
          %653 = vmatprep.subr.bf16.mxu0 0
          %654 = vmatpush1.bf16.msra.mxu0 0
          %655 = vmatprep.subr.bf16.mxu0 0
          %656 = vmatpush1.bf16.msra.mxu0 0
          %657 = vmatprep.subr.bf16.mxu0 0
          %658 = vmatpush1.bf16.msra.mxu0 0
          %659 = vmatprep.subr.bf16.mxu0 0
          %660 = vmatpush1.bf16.msra.mxu0 0
          %661 = vmatprep.subr.bf16.mxu0 0
          %662 = vmatpush1.bf16.msra.mxu0 0
          %663 = vmatprep.subr.bf16.mxu0 0
          %664 = vmatpush1.bf16.msra.mxu0 0
          %665 = vmatprep.subr.bf16.mxu0 0
          %666 = vmatpush1.bf16.msra.mxu0 0
          %667 = vmatprep.subr.bf16.mxu0 0
          %668 = vmatpush1.bf16.msra.mxu0 0
          %669 = vmatprep.subr.bf16.mxu0 0
          %670 = vmatpush1.bf16.msra.mxu0 0
          %671 = vmatprep.subr.bf16.mxu0 0
          %672 = vmatpush1.bf16.msra.mxu0 0
          %673 = vmatprep.subr.bf16.mxu0 0
          %674 = vmatpush1.bf16.msra.mxu0 0
          %675 = vmatprep.mubr.bf16.mxu0 0
          %676 = vmatmul.mubr.bf16.gmra.mrb[0].mxu0 %v641
          %v677 = vpop.f32.mrb[0].mxu0
          %v678 = vadd.f32 0.0, %v677
          %v679 = vpop.f32.mrb[0].mxu0
          %v680 = vpop.f32.mrb[0].mxu0
          %v681 = vpop.f32.mrb[0].mxu0
          %682 = vdwg.mxu0
          %v683 = vadd.f32 %v633, %v678
          %s684 = sadd.s32 %s218, 128
          %s685 = scalar_lea.vmem %s206, %s684 [#allocation7]
          %686 = vst.msk [vmem:[%s685] sm:$0xf] %vm366, %v683
          %688 = vrot.lane.b32.xlu0 %v683, 124
          %v689 = vpop.permute.xlu0 %688
          %s691 = sadd.s32 %s372, 128
          %s692 = scalar_lea.vmem %s206, %s691 [#allocation7]
          %693 = vst.msk [vmem:[%s692] sm:$0xf] %vm366, %v689
          %694 = vrot.lane.b32.xlu0 %v683, 120
          %v695 = vpop.permute.xlu0 %694
          %s697 = sadd.s32 %s378, 128
          %s698 = scalar_lea.vmem %s206, %s697 [#allocation7]
          %699 = vst.msk [vmem:[%s698] sm:$0xf] %vm366, %v695
          %700 = vrot.lane.b32.xlu0 %v683, 116
          %v701 = vpop.permute.xlu0 %700
          %s703 = sadd.s32 %s384, 128
          %s704 = scalar_lea.vmem %s206, %s703 [#allocation7]
          %705 = vst.msk [vmem:[%s704] sm:$0xf] %vm366, %v701
          %706 = vrot.lane.b32.xlu0 %v224, 80
          %v707 = vpop.permute.xlu0 %706
          %v709 = vsel %vm234, %v707, 0
          %711 = vmatprep.subr.bf16.mxu0 0
          %712 = vmatpush1.bf16.msra.mxu0 %v232
          %713 = vmatprep.subr.bf16.mxu0 0
          %714 = vmatpush1.bf16.msra.mxu0 0
          %715 = vmatprep.subr.bf16.mxu0 0
          %716 = vmatpush1.bf16.msra.mxu0 0
          %717 = vmatprep.subr.bf16.mxu0 0
          %718 = vmatpush1.bf16.msra.mxu0 0
          %719 = vmatprep.subr.bf16.mxu0 0
          %720 = vmatpush1.bf16.msra.mxu0 0
          %721 = vmatprep.subr.bf16.mxu0 0
          %722 = vmatpush1.bf16.msra.mxu0 0
          %723 = vmatprep.subr.bf16.mxu0 0
          %724 = vmatpush1.bf16.msra.mxu0 0
          %725 = vmatprep.subr.bf16.mxu0 0
          %726 = vmatpush1.bf16.msra.mxu0 0
          %727 = vmatprep.subr.bf16.mxu0 0
          %728 = vmatpush1.bf16.msra.mxu0 0
          %729 = vmatprep.subr.bf16.mxu0 0
          %730 = vmatpush1.bf16.msra.mxu0 0
          %731 = vmatprep.subr.bf16.mxu0 0
          %732 = vmatpush1.bf16.msra.mxu0 0
          %733 = vmatprep.subr.bf16.mxu0 0
          %734 = vmatpush1.bf16.msra.mxu0 0
          %735 = vmatprep.subr.bf16.mxu0 0
          %736 = vmatpush1.bf16.msra.mxu0 0
          %737 = vmatprep.subr.bf16.mxu0 0
          %738 = vmatpush1.bf16.msra.mxu0 0
          %739 = vmatprep.subr.bf16.mxu0 0
          %740 = vmatpush1.bf16.msra.mxu0 0
          %741 = vmatprep.subr.bf16.mxu0 0
          %742 = vmatpush1.bf16.msra.mxu0 0
          %743 = vmatprep.mubr.bf16.mxu0 0
          %744 = vmatmul.mubr.bf16.gmra.mrb[0].mxu0 %v709
          %v745 = vpop.f32.mrb[0].mxu0
          %v746 = vadd.f32 0.0, %v745
          %v747 = vpop.f32.mrb[0].mxu0
          %v748 = vpop.f32.mrb[0].mxu0
          %v749 = vpop.f32.mrb[0].mxu0
          %750 = vdwg.mxu0
          %751 = vrot.lane.b32.xlu0 %v221, 80
          %v752 = vpop.permute.xlu0 %751
          %v754 = vsel %vm234, %v752, 0
          %756 = vmatprep.subr.bf16.mxu0 0
          %757 = vmatpush1.bf16.msra.mxu0 %v232
          %758 = vmatprep.subr.bf16.mxu0 0
          %759 = vmatpush1.bf16.msra.mxu0 0
          %760 = vmatprep.subr.bf16.mxu0 0
          %761 = vmatpush1.bf16.msra.mxu0 0
          %762 = vmatprep.subr.bf16.mxu0 0
          %763 = vmatpush1.bf16.msra.mxu0 0
          %764 = vmatprep.subr.bf16.mxu0 0
          %765 = vmatpush1.bf16.msra.mxu0 0
          %766 = vmatprep.subr.bf16.mxu0 0
          %767 = vmatpush1.bf16.msra.mxu0 0
          %768 = vmatprep.subr.bf16.mxu0 0
          %769 = vmatpush1.bf16.msra.mxu0 0
          %770 = vmatprep.subr.bf16.mxu0 0
          %771 = vmatpush1.bf16.msra.mxu0 0
          %772 = vmatprep.subr.bf16.mxu0 0
          %773 = vmatpush1.bf16.msra.mxu0 0
          %774 = vmatprep.subr.bf16.mxu0 0
          %775 = vmatpush1.bf16.msra.mxu0 0
          %776 = vmatprep.subr.bf16.mxu0 0
          %777 = vmatpush1.bf16.msra.mxu0 0
          %778 = vmatprep.subr.bf16.mxu0 0
          %779 = vmatpush1.bf16.msra.mxu0 0
          %780 = vmatprep.subr.bf16.mxu0 0
          %781 = vmatpush1.bf16.msra.mxu0 0
          %782 = vmatprep.subr.bf16.mxu0 0
          %783 = vmatpush1.bf16.msra.mxu0 0
          %784 = vmatprep.subr.bf16.mxu0 0
          %785 = vmatpush1.bf16.msra.mxu0 0
          %786 = vmatprep.subr.bf16.mxu0 0
          %787 = vmatpush1.bf16.msra.mxu0 0
          %788 = vmatprep.mubr.bf16.mxu0 0
          %789 = vmatmul.mubr.bf16.gmra.mrb[0].mxu0 %v754
          %v790 = vpop.f32.mrb[0].mxu0
          %v791 = vadd.f32 %v746, %v790
          %v792 = vpop.f32.mrb[0].mxu0
          %v793 = vpop.f32.mrb[0].mxu0
          %v794 = vpop.f32.mrb[0].mxu0
          %795 = vdwg.mxu0
          %796 = vrot.lane.b32.xlu0 %v227, 80
          %v797 = vpop.permute.xlu0 %796
          %v799 = vsel %vm234, %v797, 0
          %801 = vmatprep.subr.bf16.mxu0 0
          %802 = vmatpush1.bf16.msra.mxu0 %v232
          %803 = vmatprep.subr.bf16.mxu0 0
          %804 = vmatpush1.bf16.msra.mxu0 0
          %805 = vmatprep.subr.bf16.mxu0 0
          %806 = vmatpush1.bf16.msra.mxu0 0
          %807 = vmatprep.subr.bf16.mxu0 0
          %808 = vmatpush1.bf16.msra.mxu0 0
          %809 = vmatprep.subr.bf16.mxu0 0
          %810 = vmatpush1.bf16.msra.mxu0 0
          %811 = vmatprep.subr.bf16.mxu0 0
          %812 = vmatpush1.bf16.msra.mxu0 0
          %813 = vmatprep.subr.bf16.mxu0 0
          %814 = vmatpush1.bf16.msra.mxu0 0
          %815 = vmatprep.subr.bf16.mxu0 0
          %816 = vmatpush1.bf16.msra.mxu0 0
          %817 = vmatprep.subr.bf16.mxu0 0
          %818 = vmatpush1.bf16.msra.mxu0 0
          %819 = vmatprep.subr.bf16.mxu0 0
          %820 = vmatpush1.bf16.msra.mxu0 0
          %821 = vmatprep.subr.bf16.mxu0 0
          %822 = vmatpush1.bf16.msra.mxu0 0
          %823 = vmatprep.subr.bf16.mxu0 0
          %824 = vmatpush1.bf16.msra.mxu0 0
          %825 = vmatprep.subr.bf16.mxu0 0
          %826 = vmatpush1.bf16.msra.mxu0 0
          %827 = vmatprep.subr.bf16.mxu0 0
          %828 = vmatpush1.bf16.msra.mxu0 0
          %829 = vmatprep.subr.bf16.mxu0 0
          %830 = vmatpush1.bf16.msra.mxu0 0
          %831 = vmatprep.subr.bf16.mxu0 0
          %832 = vmatpush1.bf16.msra.mxu0 0
          %833 = vmatprep.mubr.bf16.mxu0 0
          %834 = vmatmul.mubr.bf16.gmra.mrb[0].mxu0 %v799
          %v835 = vpop.f32.mrb[0].mxu0
          %v836 = vadd.f32 0.0, %v835
          %v837 = vpop.f32.mrb[0].mxu0
          %v838 = vpop.f32.mrb[0].mxu0
          %v839 = vpop.f32.mrb[0].mxu0
          %840 = vdwg.mxu0
          %v841 = vadd.f32 %v791, %v836
          %s842 = sadd.s32 %s218, 192
          %s843 = scalar_lea.vmem %s206, %s842 [#allocation7]
          %844 = vst.msk [vmem:[%s843] sm:$0xf] %vm366, %v841
          %846 = vrot.lane.b32.xlu0 %v841, 124
          %v847 = vpop.permute.xlu0 %846
          %s849 = sadd.s32 %s372, 192
          %s850 = scalar_lea.vmem %s206, %s849 [#allocation7]
          %851 = vst.msk [vmem:[%s850] sm:$0xf] %vm366, %v847
          %852 = vrot.lane.b32.xlu0 %v841, 120
          %v853 = vpop.permute.xlu0 %852
          %s855 = sadd.s32 %s378, 192
          %s856 = scalar_lea.vmem %s206, %s855 [#allocation7]
          %857 = vst.msk [vmem:[%s856] sm:$0xf] %vm366, %v853
          %858 = vrot.lane.b32.xlu0 %v841, 116
          %v859 = vpop.permute.xlu0 %858
          %s861 = sadd.s32 %s384, 192
          %s862 = scalar_lea.vmem %s206, %s861 [#allocation7]
          %863 = vst.msk [vmem:[%s862] sm:$0xf] %vm366, %v859
        $region41: #{tpu_custom_call.1} parent=27 // loop_footer
          %s217 = sadd.s32 1, %s213
        $region42: #{tpu_custom_call.1} parent=27 // loop_footer_branch
          %212 = sbr.rel target = $region38
        $region43: #{tpu_custom_call.1} parent=27 // loop_exit
          _
        %s864 = sand.u32 %s102, 1
        %s865 = scalar_lea.sflag [#allocation4], %s864
        %s866 = sand.u32 %s102, 1
        %s867 = smul.addr %s866, 256
        %s868 = scalar_lea.vmem [#allocation7], %s867
        // Predicated region
        $region44: #{tpu_custom_call.1} parent=27 // pred_check
          %p869 = pneg %p112
        $region45: #{tpu_custom_call.1} parent=27 // pred_check_branch
          %871 = sbr.rel (%p869) target = $region47
        $region46: #{tpu_custom_call.1} parent=27 // pred_region
          %s872 = smul.u32 4, %s26
          %s874 = ssub.s32 4096, 4096
          %875 = vsyncadd %s865, %s874
          %s876 = sadd.s32 %s27, %s872
          %s877 = smul.addr %s25, 64
          %s878 = sadd.s32 %s876, %s877
          %s879 = smul.addr %s878, 64
          %s880 = scalar_lea.hbm %s2, %s879
          %s881 = sshll.u32 %s868, 4
          %s882 = int_to_ptr.vmem [resolvable:$true] %s881
          %887 = dma.vmem_to_hbm [thread:$0]  %s882, 4096, %s880, %s865, 64, 64, 4
        $region47: #{tpu_custom_call.1} parent=27 // pred_fallthru
          _
      $region28: #{tpu_custom_call.1} parent=5 // pred_fallthru
        _
      %p888 = scmp.le.s32.totalorder 2, %s15
      // Predicated region
      $region48: #{tpu_custom_call.1} parent=5 // pred_check
        %p889 = pneg %p888
      $region49: #{tpu_custom_call.1} parent=5 // pred_check_branch
        %891 = sbr.rel (%p889) target = $region51
      $region50: #{tpu_custom_call.1} parent=5 // pred_region
        %s892 = ssub.s32 %s15, 2
        // Predicated region
        $region52: #{tpu_custom_call.1} parent=50 // pred_check
          %p893 = pneg %p118
        $region53: #{tpu_custom_call.1} parent=50 // pred_check_branch
          %895 = sbr.rel (%p893) target = $region55
        $region54: #{tpu_custom_call.1} parent=50 // pred_region
          %s896 = sand.u32 %s103, 1
          %s897 = scalar_lea.sflag [#allocation4], %s896
          %s898 = sand.u32 %s103, 1
          %s899 = smul.addr %s898, 256
          %s900 = scalar_lea.vmem [#allocation7], %s899
          %901 = dma.done %s897, 4096
        $region55: #{tpu_custom_call.1} parent=50 // pred_fallthru
          _
      $region51: #{tpu_custom_call.1} parent=5 // pred_fallthru
        _
    $region6: #{tpu_custom_call.1} parent=1 // loop_footer
      %s19 = sadd.s32 1, %s15
    $region7: #{tpu_custom_call.1} parent=1 // loop_footer_branch
      %14 = sbr.rel target = $region3
    $region8: #{tpu_custom_call.1} parent=1 // loop_exit
      _
    %902 = vsyncpa [#allocation3], 1
    %s903 = scalar_lea.sflag [#allocation3], 1
    %904 = vsyncpa %s903, 1
    %905 = vsyncpa [#allocation6], 1
    %s906 = scalar_lea.sflag [#allocation6], 1
    %907 = vsyncpa %s906, 1
    %908 = vsyncpa [#allocation4], 1
    %s909 = scalar_lea.sflag [#allocation4], 1
    %910 = vsyncpa %s909, 1

</llo_original>
